<compile_context>
chip_gen: v7x
topology: tpu7x:2x2x1
jax: 0.10.0
libtpu: 0.0.40
codegen_flags: <defaults>
</compile_context>

<pallas_src>
import functools

import jax
import jax.numpy as jnp
from jax.experimental import pallas as pl
from jax.experimental.pallas import tpu as pltpu

# Logical sizes (from the PyTorch module).
D_IN, D_H1, D_H2, D_H3 = 166, 500, 300, 100
K_TAP = 64
L_OUT = D_H3 + K_TAP - 1  # 163

# (sublane, lane)-aligned padded sizes.  Column D_IN of x, D_H1 of h1, D_H2 of h2
# and D_H3 of h3 are "carry" columns holding a constant 1.0 so biases fold into
# the weight matrices as extra contraction rows (the padding was already there).
D_IN_P, D_H1_P, D_H2_P, D_H3_P, L_OUT_P = 256, 512, 384, 128, 256


def _round_up(n, m):
    return ((n + m - 1) // m) * m


def mlp_tconv_kernel(x_ref, w1_ref, w2_ref, w3_ref, t_ref, out_ref):
    # x = relu(x)   (bf16; the bias-carry column is 1.0 and passes through ReLU)
    h = jnp.maximum(x_ref[...], 0.0)
    # relu(input(x))   -- bias = row D_IN of w1 (carry column of x is 1.0)
    h = jnp.dot(h, w1_ref[...], preferred_element_type=jnp.float32)
    h = jnp.maximum(h, 0.0).astype(jnp.bfloat16)
    # relu(hidden1(x))
    h = jnp.dot(h, w2_ref[...], preferred_element_type=jnp.float32)
    h = jnp.maximum(h, 0.0).astype(jnp.bfloat16)
    # relu(hidden2(x))
    h = jnp.dot(h, w3_ref[...], preferred_element_type=jnp.float32)
    h = jnp.maximum(h, 0.0).astype(jnp.bfloat16)
    # Tconv1d(h) == h @ Toeplitz(w) (+ bias row)   (stride=1, pad=0 transposed conv)
    out_ref[...] = jnp.dot(h, t_ref[...], preferred_element_type=jnp.float32)


def make_params(key):
    """Deterministic parameter init mirroring nn.Linear / nn.ConvTranspose1d shapes."""
    def uniform(k, shape, fan_in):
        bound = 1.0 / jnp.sqrt(jnp.float32(fan_in))
        return jax.random.uniform(k, shape, jnp.float32, -bound, bound)

    ks = jax.random.split(key, 8)
    return {
        # Stored already transposed: (in, out) so the kernel does x @ W.
        "w1": uniform(ks[0], (D_IN, D_H1), D_IN),
        "b1": uniform(ks[1], (1, D_H1), D_IN),
        "w2": uniform(ks[2], (D_H1, D_H2), D_H1),
        "b2": uniform(ks[3], (1, D_H2), D_H1),
        "w3": uniform(ks[4], (D_H2, D_H3), D_H2),
        "b3": uniform(ks[5], (1, D_H3), D_H2),
        # ConvTranspose1d(1, 1, 64): weight (1,1,64) -> (64,), bias (1,)
        "wt": uniform(ks[6], (K_TAP,), K_TAP),
        "bt": uniform(ks[7], (1,), K_TAP),
    }


def build_tconv_toeplitz(w_tap, bias, L_in=D_H3, K=K_TAP):
    """T[l, j] = w[j - l] for 0 <= j - l < K; output length L_in + K - 1."""
    L_o = L_in + K - 1
    l = jnp.arange(L_in)[:, None]
    j = jnp.arange(L_o)[None, :]
    k = j - l
    T = jnp.where((k >= 0) & (k < K), w_tap[jnp.clip(k, 0, K - 1)], 0.0)
    tb = jnp.broadcast_to(bias.reshape(1, 1), (1, L_o)).astype(jnp.float32)
    return T.astype(jnp.float32), tb


def prepare_params(params):
    """One-time prep: build Toeplitz, zero-pad, fold biases, cast to bf16.

    Each padded matmul input has one carry column equal to 1.0; placing the bias
    vector in the matching weight row (plus a single 1.0 to propagate the carry)
    makes every Linear / ConvTranspose bias part of the MXU matmul, removing the
    broadcast-adds from the kernel's VPU path.
    """
    T, _ = build_tconv_toeplitz(params["wt"], params["bt"])

    w1 = jnp.zeros((D_IN_P, D_H1_P), jnp.float32)
    w1 = w1.at[:D_IN, :D_H1].set(params["w1"])
    w1 = w1.at[D_IN, :D_H1].set(params["b1"][0])
    w1 = w1.at[D_IN, D_H1].set(1.0)            # propagate the carry to layer 2

    w2 = jnp.zeros((D_H1_P, D_H2_P), jnp.float32)
    w2 = w2.at[:D_H1, :D_H2].set(params["w2"])
    w2 = w2.at[D_H1, :D_H2].set(params["b2"][0])
    w2 = w2.at[D_H1, D_H2].set(1.0)

    w3 = jnp.zeros((D_H2_P, D_H3_P), jnp.float32)
    w3 = w3.at[:D_H2, :D_H3].set(params["w3"])
    w3 = w3.at[D_H2, :D_H3].set(params["b3"][0])
    w3 = w3.at[D_H2, D_H3].set(1.0)

    t = jnp.zeros((D_H3_P, L_OUT_P), jnp.float32)
    t = t.at[:D_H3, :L_OUT].set(T)
    t = t.at[D_H3, :L_OUT].set(params["bt"][0])  # conv bias broadcast over L_OUT

    cast = lambda a: a.astype(jnp.bfloat16)
    return {"w1": cast(w1), "w2": cast(w2), "w3": cast(w3), "T": cast(t)}


@functools.partial(jax.jit, static_argnames=("tm",))
def neural_network3_forward(x_ncl, prep, tm=1024):
    """x_ncl: (N, 1, 166) float32  ->  (N, 1, 163) float32"""
    N = x_ncl.shape[0]

    # Batch tile: multiple of 16 (bf16 sublane packing), capped at `tm`, and —
    # when the batch is big enough — chosen so the grid has >= 2 steps so the
    # "parallel" batch axis can shard across v7x's two TensorCores.
    TM = min(tm, _round_up(N, 16))
    if N >= 32:
        TM = min(TM, _round_up(pl.cdiv(N, 2), 16))
    N_pad = _round_up(N, TM)

    # bf16 activation stream: append the constant-1 bias-carry column, cast to
    # bf16 once, then zero-pad rows/columns (padded copy is written as bf16).
    x2d = x_ncl.reshape(N, D_IN).astype(jnp.float32)
    x_aug = jnp.concatenate(
        [x2d, jnp.ones((N, 1), jnp.float32)], axis=1).astype(jnp.bfloat16)
    x_p = jnp.pad(x_aug, ((0, N_pad - N), (0, D_IN_P - (D_IN + 1))))

    def resident(shape):
        # Weight blocks: same block for every grid step -> stays resident in VMEM.
        return pl.BlockSpec(shape, lambda i: (0, 0))

    out2d = pl.pallas_call(
        mlp_tconv_kernel,
        out_shape=jax.ShapeDtypeStruct((N_pad, L_OUT_P), jnp.float32),
        grid=(N_pad // TM,),
        in_specs=[
            pl.BlockSpec((TM, D_IN_P), lambda i: (i, 0)),
            resident((D_IN_P, D_H1_P)),
            resident((D_H1_P, D_H2_P)),
            resident((D_H2_P, D_H3_P)),
            resident((D_H3_P, L_OUT_P)),
        ],
        out_specs=pl.BlockSpec((TM, L_OUT_P), lambda i: (i, 0)),
        compiler_params=pltpu.CompilerParams(
            dimension_semantics=("parallel",)),
    )(x_p, prep["w1"], prep["w2"], prep["w3"], prep["T"])

    # Padded batch rows / padded output columns are garbage/zero: always slice.
    return out2d[:N, :L_OUT].reshape(N, 1, L_OUT)


def reference_forward(x_ncl, params):
    """Pure-JAX reference mirroring the kernel math (bf16 MXU operands, f32 accum)."""
    N = x_ncl.shape[0]

    def mm(a, w):
        return jnp.dot(a.astype(jnp.bfloat16), w.astype(jnp.bfloat16),
                       preferred_element_type=jnp.float32)

    x = jnp.maximum(x_ncl.reshape(N, D_IN), 0.0)
    h = jnp.maximum(mm(x, params["w1"]) + params["b1"], 0.0)
    h = jnp.maximum(mm(h, params["w2"]) + params["b2"], 0.0)
    h = jnp.maximum(mm(h, params["w3"]) + params["b3"], 0.0)
    T, tb = build_tconv_toeplitz(params["wt"], params["bt"])
    return (mm(h, T) + tb).reshape(N, 1, L_OUT)


if __name__ == "__main__":
    key = jax.random.PRNGKey(0)
    pkey, xkey = jax.random.split(key)
    params = make_params(pkey)
    prep = prepare_params(params)   # one-time: Toeplitz + bias folding + bf16 cast

    # Small batch; forward implies input (N, 1, 166) so ConvTranspose1d sees (N, 1, 100).
    x = jax.random.normal(xkey, (2, 1, 166), dtype=jnp.float32)

    out = jax.block_until_ready(neural_network3_forward(x, prep))
    ref = jax.block_until_ready(reference_forward(x, params))

    assert out.shape == (2, 1, 163)
    assert jnp.allclose(out, ref, atol=1e-2, rtol=1e-2), (
        float(jnp.max(jnp.abs(out - ref))))

    print("KERNEL_OK")
</pallas_src>

<mosaic_0001>
module attributes {stable_mosaic.version = 11 : i64} {
  func.func @mlp_tconv_kernel(%arg0: i32, %arg1: memref<16x256xbf16, #tpu.memory_space<vmem>>, %arg2: memref<256x512xbf16, #tpu.memory_space<vmem>>, %arg3: memref<512x384xbf16, #tpu.memory_space<vmem>>, %arg4: memref<384x128xbf16, #tpu.memory_space<vmem>>, %arg5: memref<128x256xbf16, #tpu.memory_space<vmem>>, %arg6: memref<16x256xf32, #tpu.memory_space<vmem>>) attributes {dimension_semantics = [#tpu.dimension_semantics<parallel>], iteration_bounds = array<i64: 1>, scalar_prefetch = 0 : i64, scratch_operands = 0 : i64, tpu.core_type = #tpu.core_type<tc>, window_params = [{transform_indices = @transform_0, window_bounds = array<i64: 16, 256>}, {pipeline_mode = #tpu.pipeline_mode<synchronous>, transform_indices = @transform_1, window_bounds = array<i64: 256, 512>}, {pipeline_mode = #tpu.pipeline_mode<synchronous>, transform_indices = @transform_2, window_bounds = array<i64: 512, 384>}, {pipeline_mode = #tpu.pipeline_mode<synchronous>, transform_indices = @transform_3, window_bounds = array<i64: 384, 128>}, {pipeline_mode = #tpu.pipeline_mode<synchronous>, transform_indices = @transform_4, window_bounds = array<i64: 128, 256>}, {transform_indices = @transform_5, window_bounds = array<i64: 16, 256>}]} {
    %c0 = arith.constant 0 : index
    %c0_0 = arith.constant 0 : index
    %0 = vector.load %arg1[%c0, %c0_0] : memref<16x256xbf16, #tpu.memory_space<vmem>>, vector<16x256xbf16>
    %cst = arith.constant 0.000000e+00 : bf16
    %1 = vector.broadcast %cst : bf16 to vector<16x256xbf16>
    %2 = arith.maximumf %0, %1 : vector<16x256xbf16>
    %c0_1 = arith.constant 0 : index
    %c0_2 = arith.constant 0 : index
    %3 = vector.load %arg2[%c0_1, %c0_2] : memref<256x512xbf16, #tpu.memory_space<vmem>>, vector<256x512xbf16>
    %cst_3 = arith.constant dense<0.000000e+00> : vector<16x512xf32>
    %4 = tpu.matmul %2, %3, %cst_3 {dimension_numbers = #tpu.dot_dimension_numbers<[1], [0], [0], [1], [0, 0, 1, 1], [], []>} : vector<16x256xbf16>, vector<256x512xbf16>, vector<16x512xf32> -> vector<16x512xf32>
    %cst_4 = arith.constant 0.000000e+00 : f32
    %5 = vector.broadcast %cst_4 : f32 to vector<16x512xf32>
    %6 = arith.maximumf %4, %5 : vector<16x512xf32>
    %7 = arith.truncf %6 : vector<16x512xf32> to vector<16x512xbf16>
    %c0_5 = arith.constant 0 : index
    %c0_6 = arith.constant 0 : index
    %8 = vector.load %arg3[%c0_5, %c0_6] : memref<512x384xbf16, #tpu.memory_space<vmem>>, vector<512x384xbf16>
    %cst_7 = arith.constant dense<0.000000e+00> : vector<16x384xf32>
    %9 = tpu.matmul %7, %8, %cst_7 {dimension_numbers = #tpu.dot_dimension_numbers<[1], [0], [0], [1], [0, 0, 1, 1], [], []>} : vector<16x512xbf16>, vector<512x384xbf16>, vector<16x384xf32> -> vector<16x384xf32>
    %cst_8 = arith.constant 0.000000e+00 : f32
    %10 = vector.broadcast %cst_8 : f32 to vector<16x384xf32>
    %11 = arith.maximumf %9, %10 : vector<16x384xf32>
    %12 = arith.truncf %11 : vector<16x384xf32> to vector<16x384xbf16>
    %c0_9 = arith.constant 0 : index
    %c0_10 = arith.constant 0 : index
    %13 = vector.load %arg4[%c0_9, %c0_10] : memref<384x128xbf16, #tpu.memory_space<vmem>>, vector<384x128xbf16>
    %cst_11 = arith.constant dense<0.000000e+00> : vector<16x128xf32>
    %14 = tpu.matmul %12, %13, %cst_11 {dimension_numbers = #tpu.dot_dimension_numbers<[1], [0], [0], [1], [0, 0, 1, 1], [], []>} : vector<16x384xbf16>, vector<384x128xbf16>, vector<16x128xf32> -> vector<16x128xf32>
    %cst_12 = arith.constant 0.000000e+00 : f32
    %15 = vector.broadcast %cst_12 : f32 to vector<16x128xf32>
    %16 = arith.maximumf %14, %15 : vector<16x128xf32>
    %17 = arith.truncf %16 : vector<16x128xf32> to vector<16x128xbf16>
    %c0_13 = arith.constant 0 : index
    %c0_14 = arith.constant 0 : index
    %18 = vector.load %arg5[%c0_13, %c0_14] : memref<128x256xbf16, #tpu.memory_space<vmem>>, vector<128x256xbf16>
    %cst_15 = arith.constant dense<0.000000e+00> : vector<16x256xf32>
    %19 = tpu.matmul %17, %18, %cst_15 {dimension_numbers = #tpu.dot_dimension_numbers<[1], [0], [0], [1], [0, 0, 1, 1], [], []>} : vector<16x128xbf16>, vector<128x256xbf16>, vector<16x256xf32> -> vector<16x256xf32>
    %c0_16 = arith.constant 0 : index
    %c0_17 = arith.constant 0 : index
    %20 = vector.load %arg6[%c0_16, %c0_17] : memref<16x256xf32, #tpu.memory_space<vmem>>, vector<16x256xf32>
    tpu.vector_store %arg6[%c0_16, %c0_17], %19 {strides = array<i32>} : memref<16x256xf32, #tpu.memory_space<vmem>>, vector<16x256xf32>,
    return
  }
  func.func @transform_0(%arg0: i32) -> (i32, i32) {
    %c0_i32 = arith.constant 0 : i32
    %c0_i32_0 = arith.constant 0 : i32
    return %arg0, %c0_i32 : i32, i32
  }
  func.func @transform_1(%arg0: i32) -> (i32, i32) {
    %c0_i32 = arith.constant 0 : i32
    %c0_i32_0 = arith.constant 0 : i32
    %c0_i32_1 = arith.constant 0 : i32
    return %c0_i32, %c0_i32_0 : i32, i32
  }
  func.func @transform_2(%arg0: i32) -> (i32, i32) {
    %c0_i32 = arith.constant 0 : i32
    %c0_i32_0 = arith.constant 0 : i32
    %c0_i32_1 = arith.constant 0 : i32
    return %c0_i32, %c0_i32_0 : i32, i32
  }
  func.func @transform_3(%arg0: i32) -> (i32, i32) {
    %c0_i32 = arith.constant 0 : i32
    %c0_i32_0 = arith.constant 0 : i32
    %c0_i32_1 = arith.constant 0 : i32
    return %c0_i32, %c0_i32_0 : i32, i32
  }
  func.func @transform_4(%arg0: i32) -> (i32, i32) {
    %c0_i32 = arith.constant 0 : i32
    %c0_i32_0 = arith.constant 0 : i32
    %c0_i32_1 = arith.constant 0 : i32
    return %c0_i32, %c0_i32_0 : i32, i32
  }
  func.func @transform_5(%arg0: i32) -> (i32, i32) {
    %c0_i32 = arith.constant 0 : i32
    %c0_i32_0 = arith.constant 0 : i32
    return %arg0, %c0_i32 : i32, i32
  }
}

</mosaic_0001>

<llo_original>
// kernel: neural_network3_forward.1
$region0: #{neural_network3_forward.1}
  #allocation0 [shape = 'u32[]', space=smem, size = 0x4, offset = 0x4, fixed_abs, tag = 'smem constant byte address 0x4 - core index']
  #allocation1 [shape = 'u32[144,128]{1,0:T(1,128)}', space=vmem, size = 0x12000, scoped, tag = 'internal scratch']
  %s0 = inlined_call_operand.vmem [shape: bf16[16,256], index: 0, kind: input, shape index: {}]
  %s1 = inlined_call_operand.hbm [shape: bf16[256,512], index: 1, kind: input, shape index: {}]
  %s2 = inlined_call_operand.hbm [shape: bf16[512,384], index: 2, kind: input, shape index: {}]
  %s3 = inlined_call_operand.hbm [shape: bf16[384,128], index: 3, kind: input, shape index: {}]
  %s4 = inlined_call_operand.hbm [shape: bf16[128,256], index: 4, kind: input, shape index: {}]
  %s5 = inlined_call_operand.vmem [shape: f32[16,256], index: 5, kind: output, shape index: {}]
  %s6 = sld [smem:[#allocation0]]
  $region46: #{neural_network3_forward.1} parent=0
    _
  %s8 = ssub.s32 1, %s6
  %s9 = scalar_select 0, %s8, %s6
  $region1: #{neural_network3_forward.1} parent=0
    #allocation2 [shape = 'u8[262144]{0}', space=vmem, size = 0x40000, scoped, tag = 'input window, operand 1, single buffered']
    #allocation3 [shape = 's32[1]{0}', space=sflag, size = 0x4, scoped, tag = 'scoped memory for neural_network3_forward.1']
    #allocation4 [shape = 'u8[393216]{0}', space=vmem, size = 0x60000, scoped, tag = 'input window, operand 2, single buffered']
    #allocation5 [shape = 's32[1]{0}', space=sflag, size = 0x4, scoped, tag = 'scoped memory for neural_network3_forward.1']
    #allocation6 [shape = 'u8[98304]{0}', space=vmem, size = 0x18000, scoped, tag = 'input window, operand 3, single buffered']
    #allocation7 [shape = 'u8[65536]{0}', space=vmem, size = 0x10000, scoped, tag = 'input window, operand 4, single buffered']
    #allocation8 [shape = 's32[1]{0}', space=sflag, size = 0x4, scoped, tag = 'scoped memory for neural_network3_forward.1']
    %10 = vsyncpa [#allocation3], 0
    %11 = vsyncpa [#allocation5], 0
    %12 = vsyncpa [#allocation8], 0
    // Predicated region
    $region2: #{neural_network3_forward.1} parent=1 // pred_check
      _
    $region3: #{neural_network3_forward.1} parent=1 // pred_check_branch
      %14 = sbr.rel (0) target = $region5
    $region4: #{neural_network3_forward.1} parent=1 // pred_region
      _
    $region5: #{neural_network3_forward.1} parent=1 // pred_fallthru
      _
    // Predicated region
    $region6: #{neural_network3_forward.1} parent=1 // pred_check
      _
    $region7: #{neural_network3_forward.1} parent=1 // pred_check_branch
      %16 = sbr.rel (0) target = $region9
    $region8: #{neural_network3_forward.1} parent=1 // pred_region
      %s18 = ssub.s32 8192, 8192
      %19 = vsyncadd [#allocation3], %s18
      %s20 = sshll.u32 [#allocation2], 4
      %s21 = int_to_ptr.vmem [resolvable:$true] %s20
      %26 = dma.hbm_to_vmem [thread:$0]  %s1, 8192, %s21, [#allocation3], 256, 256, 16
    $region9: #{neural_network3_forward.1} parent=1 // pred_fallthru
      _
    // Predicated region
    $region10: #{neural_network3_forward.1} parent=1 // pred_check
      _
    $region11: #{neural_network3_forward.1} parent=1 // pred_check_branch
      %28 = sbr.rel (0) target = $region13
    $region12: #{neural_network3_forward.1} parent=1 // pred_region
      %s30 = ssub.s32 12288, 12288
      %31 = vsyncadd [#allocation5], %s30
      %s32 = sshll.u32 [#allocation4], 4
      %s33 = int_to_ptr.vmem [resolvable:$true] %s32
      %38 = dma.hbm_to_vmem [thread:$0]  %s2, 12288, %s33, [#allocation5], 192, 192, 12
    $region13: #{neural_network3_forward.1} parent=1 // pred_fallthru
      _
    // Predicated region
    $region14: #{neural_network3_forward.1} parent=1 // pred_check
      _
    $region15: #{neural_network3_forward.1} parent=1 // pred_check_branch
      %40 = sbr.rel (0) target = $region17
    $region16: #{neural_network3_forward.1} parent=1 // pred_region
      %s42 = ssub.s32 3072, 3072
      %43 = vsyncadd [#allocation5], %s42
      %s44 = sshll.u32 [#allocation6], 4
      %s45 = int_to_ptr.vmem [resolvable:$true] %s44
      %50 = dma.hbm_to_vmem [thread:$0]  %s3, 3072, %s45, [#allocation5], 64, 64, 4
    $region17: #{neural_network3_forward.1} parent=1 // pred_fallthru
      _
    // Predicated region
    $region18: #{neural_network3_forward.1} parent=1 // pred_check
      _
    $region19: #{neural_network3_forward.1} parent=1 // pred_check_branch
      %52 = sbr.rel (0) target = $region21
    $region20: #{neural_network3_forward.1} parent=1 // pred_region
      %s54 = ssub.s32 2048, 2048
      %55 = vsyncadd [#allocation8], %s54
      %s56 = sshll.u32 [#allocation7], 4
      %s57 = int_to_ptr.vmem [resolvable:$true] %s56
      %62 = dma.hbm_to_vmem [thread:$0]  %s4, 2048, %s57, [#allocation8], 128, 128, 8
    $region21: #{neural_network3_forward.1} parent=1 // pred_fallthru
      _
    // Predicated region
    $region22: #{neural_network3_forward.1} parent=1 // pred_check
      _
    $region23: #{neural_network3_forward.1} parent=1 // pred_check_branch
      %64 = sbr.rel (0) target = $region25
    $region24: #{neural_network3_forward.1} parent=1 // pred_region
      %65 = dma.done [#allocation3], 8192
    $region25: #{neural_network3_forward.1} parent=1 // pred_fallthru
      _
    // Predicated region
    $region26: #{neural_network3_forward.1} parent=1 // pred_check
      _
    $region27: #{neural_network3_forward.1} parent=1 // pred_check_branch
      %67 = sbr.rel (0) target = $region29
    $region28: #{neural_network3_forward.1} parent=1 // pred_region
      %68 = dma.done [#allocation5], 12288
    $region29: #{neural_network3_forward.1} parent=1 // pred_fallthru
      _
    // Predicated region
    $region30: #{neural_network3_forward.1} parent=1 // pred_check
      _
    $region31: #{neural_network3_forward.1} parent=1 // pred_check_branch
      %70 = sbr.rel (0) target = $region33
    $region32: #{neural_network3_forward.1} parent=1 // pred_region
      %71 = dma.done [#allocation5], 3072
    $region33: #{neural_network3_forward.1} parent=1 // pred_fallthru
      _
    // Predicated region
    $region34: #{neural_network3_forward.1} parent=1 // pred_check
      _
    $region35: #{neural_network3_forward.1} parent=1 // pred_check_branch
      %73 = sbr.rel (0) target = $region37
    $region36: #{neural_network3_forward.1} parent=1 // pred_region
      %74 = dma.done [#allocation8], 2048
    $region37: #{neural_network3_forward.1} parent=1 // pred_fallthru
      _
    %v76 = vld [vmem:[%s0] sm:$0xff]
    %v77 = vld [vmem:[%s0 + $0x8] sm:$0xff]
    %v78 = vmax.bf16 %v76, 0
    %v79 = vmax.bf16 %v77, 0
    %v80 = vld [vmem:[#allocation2] sm:$0xff]
    %v81 = vld [vmem:[#allocation2 + $0x8] sm:$0xff]
    %v82 = vld [vmem:[#allocation2 + $0x10] sm:$0xff]
    %v83 = vld [vmem:[#allocation2 + $0x18] sm:$0xff]
    %v84 = vld [vmem:[#allocation2 + $0x20] sm:$0xff]
    %v85 = vld [vmem:[#allocation2 + $0x28] sm:$0xff]
    %v86 = vld [vmem:[#allocation2 + $0x30] sm:$0xff]
    %v87 = vld [vmem:[#allocation2 + $0x38] sm:$0xff]
    %v88 = vld [vmem:[#allocation2 + $0x40] sm:$0xff]
    %v89 = vld [vmem:[#allocation2 + $0x48] sm:$0xff]
    %v90 = vld [vmem:[#allocation2 + $0x50] sm:$0xff]
    %v91 = vld [vmem:[#allocation2 + $0x58] sm:$0xff]
    %v92 = vld [vmem:[#allocation2 + $0x60] sm:$0xff]
    %v93 = vld [vmem:[#allocation2 + $0x68] sm:$0xff]
    %v94 = vld [vmem:[#allocation2 + $0x70] sm:$0xff]
    %v95 = vld [vmem:[#allocation2 + $0x78] sm:$0xff]
    %v96 = vld [vmem:[#allocation2 + $0x80] sm:$0xff]
    %v97 = vld [vmem:[#allocation2 + $0x88] sm:$0xff]
    %v98 = vld [vmem:[#allocation2 + $0x90] sm:$0xff]
    %v99 = vld [vmem:[#allocation2 + $0x98] sm:$0xff]
    %v100 = vld [vmem:[#allocation2 + $0xa0] sm:$0xff]
    %v101 = vld [vmem:[#allocation2 + $0xa8] sm:$0xff]
    %v102 = vld [vmem:[#allocation2 + $0xb0] sm:$0xff]
    %v103 = vld [vmem:[#allocation2 + $0xb8] sm:$0xff]
    %v104 = vld [vmem:[#allocation2 + $0xc0] sm:$0xff]
    %v105 = vld [vmem:[#allocation2 + $0xc8] sm:$0xff]
    %v106 = vld [vmem:[#allocation2 + $0xd0] sm:$0xff]
    %v107 = vld [vmem:[#allocation2 + $0xd8] sm:$0xff]
    %v108 = vld [vmem:[#allocation2 + $0xe0] sm:$0xff]
    %v109 = vld [vmem:[#allocation2 + $0xe8] sm:$0xff]
    %v110 = vld [vmem:[#allocation2 + $0xf0] sm:$0xff]
    %v111 = vld [vmem:[#allocation2 + $0xf8] sm:$0xff]
    %v112 = vld [vmem:[#allocation2 + $0x100] sm:$0xff]
    %v113 = vld [vmem:[#allocation2 + $0x108] sm:$0xff]
    %v114 = vld [vmem:[#allocation2 + $0x110] sm:$0xff]
    %v115 = vld [vmem:[#allocation2 + $0x118] sm:$0xff]
    %v116 = vld [vmem:[#allocation2 + $0x120] sm:$0xff]
    %v117 = vld [vmem:[#allocation2 + $0x128] sm:$0xff]
    %v118 = vld [vmem:[#allocation2 + $0x130] sm:$0xff]
    %v119 = vld [vmem:[#allocation2 + $0x138] sm:$0xff]
    %v120 = vld [vmem:[#allocation2 + $0x140] sm:$0xff]
    %v121 = vld [vmem:[#allocation2 + $0x148] sm:$0xff]
    %v122 = vld [vmem:[#allocation2 + $0x150] sm:$0xff]
    %v123 = vld [vmem:[#allocation2 + $0x158] sm:$0xff]
    %v124 = vld [vmem:[#allocation2 + $0x160] sm:$0xff]
    %v125 = vld [vmem:[#allocation2 + $0x168] sm:$0xff]
    %v126 = vld [vmem:[#allocation2 + $0x170] sm:$0xff]
    %v127 = vld [vmem:[#allocation2 + $0x178] sm:$0xff]
    %v128 = vld [vmem:[#allocation2 + $0x180] sm:$0xff]
    %v129 = vld [vmem:[#allocation2 + $0x188] sm:$0xff]
    %v130 = vld [vmem:[#allocation2 + $0x190] sm:$0xff]
    %v131 = vld [vmem:[#allocation2 + $0x198] sm:$0xff]
    %v132 = vld [vmem:[#allocation2 + $0x1a0] sm:$0xff]
    %v133 = vld [vmem:[#allocation2 + $0x1a8] sm:$0xff]
    %v134 = vld [vmem:[#allocation2 + $0x1b0] sm:$0xff]
    %v135 = vld [vmem:[#allocation2 + $0x1b8] sm:$0xff]
    %v136 = vld [vmem:[#allocation2 + $0x1c0] sm:$0xff]
    %v137 = vld [vmem:[#allocation2 + $0x1c8] sm:$0xff]
    %v138 = vld [vmem:[#allocation2 + $0x1d0] sm:$0xff]
    %v139 = vld [vmem:[#allocation2 + $0x1d8] sm:$0xff]
    %v140 = vld [vmem:[#allocation2 + $0x1e0] sm:$0xff]
    %v141 = vld [vmem:[#allocation2 + $0x1e8] sm:$0xff]
    %v142 = vld [vmem:[#allocation2 + $0x1f0] sm:$0xff]
    %v143 = vld [vmem:[#allocation2 + $0x1f8] sm:$0xff]
    %v146 = vunpack.c.l.b16 %v78
    %v147 = vunpack.c.h.b16 %v78
    %v148 = vunpack.c.l.b16 %v79
    %v149 = vunpack.c.h.b16 %v79
    %v150 = vpack.c.b16 %v148, %v146
    %v151 = vpack.c.b16 %v149, %v147
    %v218 = vunpack.c.l.b16 %v80
    %v219 = vunpack.c.h.b16 %v80
    %v220 = vunpack.c.l.b16 %v81
    %v221 = vunpack.c.h.b16 %v81
    %v222 = vunpack.c.l.b16 %v82
    %v223 = vunpack.c.h.b16 %v82
    %v224 = vunpack.c.l.b16 %v83
    %v225 = vunpack.c.h.b16 %v83
    %v226 = vunpack.c.l.b16 %v84
    %v227 = vunpack.c.h.b16 %v84
    %v228 = vunpack.c.l.b16 %v85
    %v229 = vunpack.c.h.b16 %v85
    %v230 = vunpack.c.l.b16 %v86
    %v231 = vunpack.c.h.b16 %v86
    %v232 = vunpack.c.l.b16 %v87
    %v233 = vunpack.c.h.b16 %v87
    %v234 = vunpack.c.l.b16 %v88
    %v235 = vunpack.c.h.b16 %v88
    %v236 = vunpack.c.l.b16 %v89
    %v237 = vunpack.c.h.b16 %v89
    %v238 = vunpack.c.l.b16 %v90
    %v239 = vunpack.c.h.b16 %v90
    %v240 = vunpack.c.l.b16 %v91
    %v241 = vunpack.c.h.b16 %v91
    %v242 = vunpack.c.l.b16 %v92
    %v243 = vunpack.c.h.b16 %v92
    %v244 = vunpack.c.l.b16 %v93
    %v245 = vunpack.c.h.b16 %v93
    %v246 = vunpack.c.l.b16 %v94
    %v247 = vunpack.c.h.b16 %v94
    %v248 = vunpack.c.l.b16 %v95
    %v249 = vunpack.c.h.b16 %v95
    %v250 = vunpack.c.l.b16 %v96
    %v251 = vunpack.c.h.b16 %v96
    %v252 = vunpack.c.l.b16 %v97
    %v253 = vunpack.c.h.b16 %v97
    %v254 = vunpack.c.l.b16 %v98
    %v255 = vunpack.c.h.b16 %v98
    %v256 = vunpack.c.l.b16 %v99
    %v257 = vunpack.c.h.b16 %v99
    %v258 = vunpack.c.l.b16 %v100
    %v259 = vunpack.c.h.b16 %v100
    %v260 = vunpack.c.l.b16 %v101
    %v261 = vunpack.c.h.b16 %v101
    %v262 = vunpack.c.l.b16 %v102
    %v263 = vunpack.c.h.b16 %v102
    %v264 = vunpack.c.l.b16 %v103
    %v265 = vunpack.c.h.b16 %v103
    %v266 = vunpack.c.l.b16 %v104
    %v267 = vunpack.c.h.b16 %v104
    %v268 = vunpack.c.l.b16 %v105
    %v269 = vunpack.c.h.b16 %v105
    %v270 = vunpack.c.l.b16 %v106
    %v271 = vunpack.c.h.b16 %v106
    %v272 = vunpack.c.l.b16 %v107
    %v273 = vunpack.c.h.b16 %v107
    %v274 = vunpack.c.l.b16 %v108
    %v275 = vunpack.c.h.b16 %v108
    %v276 = vunpack.c.l.b16 %v109
    %v277 = vunpack.c.h.b16 %v109
    %v278 = vunpack.c.l.b16 %v110
    %v279 = vunpack.c.h.b16 %v110
    %v280 = vunpack.c.l.b16 %v111
    %v281 = vunpack.c.h.b16 %v111
    %v282 = vunpack.c.l.b16 %v112
    %v283 = vunpack.c.h.b16 %v112
    %v284 = vunpack.c.l.b16 %v113
    %v285 = vunpack.c.h.b16 %v113
    %v286 = vunpack.c.l.b16 %v114
    %v287 = vunpack.c.h.b16 %v114
    %v288 = vunpack.c.l.b16 %v115
    %v289 = vunpack.c.h.b16 %v115
    %v290 = vunpack.c.l.b16 %v116
    %v291 = vunpack.c.h.b16 %v116
    %v292 = vunpack.c.l.b16 %v117
    %v293 = vunpack.c.h.b16 %v117
    %v294 = vunpack.c.l.b16 %v118
    %v295 = vunpack.c.h.b16 %v118
    %v296 = vunpack.c.l.b16 %v119
    %v297 = vunpack.c.h.b16 %v119
    %v298 = vunpack.c.l.b16 %v120
    %v299 = vunpack.c.h.b16 %v120
    %v300 = vunpack.c.l.b16 %v121
    %v301 = vunpack.c.h.b16 %v121
    %v302 = vunpack.c.l.b16 %v122
    %v303 = vunpack.c.h.b16 %v122
    %v304 = vunpack.c.l.b16 %v123
    %v305 = vunpack.c.h.b16 %v123
    %v306 = vunpack.c.l.b16 %v124
    %v307 = vunpack.c.h.b16 %v124
    %v308 = vunpack.c.l.b16 %v125
    %v309 = vunpack.c.h.b16 %v125
    %v310 = vunpack.c.l.b16 %v126
    %v311 = vunpack.c.h.b16 %v126
    %v312 = vunpack.c.l.b16 %v127
    %v313 = vunpack.c.h.b16 %v127
    %v314 = vunpack.c.l.b16 %v128
    %v315 = vunpack.c.h.b16 %v128
    %v316 = vunpack.c.l.b16 %v129
    %v317 = vunpack.c.h.b16 %v129
    %v318 = vunpack.c.l.b16 %v130
    %v319 = vunpack.c.h.b16 %v130
    %v320 = vunpack.c.l.b16 %v131
    %v321 = vunpack.c.h.b16 %v131
    %v322 = vunpack.c.l.b16 %v132
    %v323 = vunpack.c.h.b16 %v132
    %v324 = vunpack.c.l.b16 %v133
    %v325 = vunpack.c.h.b16 %v133
    %v326 = vunpack.c.l.b16 %v134
    %v327 = vunpack.c.h.b16 %v134
    %v328 = vunpack.c.l.b16 %v135
    %v329 = vunpack.c.h.b16 %v135
    %v330 = vunpack.c.l.b16 %v136
    %v331 = vunpack.c.h.b16 %v136
    %v332 = vunpack.c.l.b16 %v137
    %v333 = vunpack.c.h.b16 %v137
    %v334 = vunpack.c.l.b16 %v138
    %v335 = vunpack.c.h.b16 %v138
    %v336 = vunpack.c.l.b16 %v139
    %v337 = vunpack.c.h.b16 %v139
    %v338 = vunpack.c.l.b16 %v140
    %v339 = vunpack.c.h.b16 %v140
    %v340 = vunpack.c.l.b16 %v141
    %v341 = vunpack.c.h.b16 %v141
    %v342 = vunpack.c.l.b16 %v142
    %v343 = vunpack.c.h.b16 %v142
    %v344 = vunpack.c.l.b16 %v143
    %v345 = vunpack.c.h.b16 %v143
    %v346 = vpack.c.b16 %v222, %v218
    %v347 = vpack.c.b16 %v223, %v219
    %v348 = vpack.c.b16 %v224, %v220
    %v349 = vpack.c.b16 %v225, %v221
    %v350 = vpack.c.b16 %v230, %v226
    %v351 = vpack.c.b16 %v231, %v227
    %v352 = vpack.c.b16 %v232, %v228
    %v353 = vpack.c.b16 %v233, %v229
    %v354 = vpack.c.b16 %v238, %v234
    %v355 = vpack.c.b16 %v239, %v235
    %v356 = vpack.c.b16 %v240, %v236
    %v357 = vpack.c.b16 %v241, %v237
    %v358 = vpack.c.b16 %v246, %v242
    %v359 = vpack.c.b16 %v247, %v243
    %v360 = vpack.c.b16 %v248, %v244
    %v361 = vpack.c.b16 %v249, %v245
    %v362 = vpack.c.b16 %v254, %v250
    %v363 = vpack.c.b16 %v255, %v251
    %v364 = vpack.c.b16 %v256, %v252
    %v365 = vpack.c.b16 %v257, %v253
    %v366 = vpack.c.b16 %v262, %v258
    %v367 = vpack.c.b16 %v263, %v259
    %v368 = vpack.c.b16 %v264, %v260
    %v369 = vpack.c.b16 %v265, %v261
    %v370 = vpack.c.b16 %v270, %v266
    %v371 = vpack.c.b16 %v271, %v267
    %v372 = vpack.c.b16 %v272, %v268
    %v373 = vpack.c.b16 %v273, %v269
    %v374 = vpack.c.b16 %v278, %v274
    %v375 = vpack.c.b16 %v279, %v275
    %v376 = vpack.c.b16 %v280, %v276
    %v377 = vpack.c.b16 %v281, %v277
    %v378 = vpack.c.b16 %v286, %v282
    %v379 = vpack.c.b16 %v287, %v283
    %v380 = vpack.c.b16 %v288, %v284
    %v381 = vpack.c.b16 %v289, %v285
    %v382 = vpack.c.b16 %v294, %v290
    %v383 = vpack.c.b16 %v295, %v291
    %v384 = vpack.c.b16 %v296, %v292
    %v385 = vpack.c.b16 %v297, %v293
    %v386 = vpack.c.b16 %v302, %v298
    %v387 = vpack.c.b16 %v303, %v299
    %v388 = vpack.c.b16 %v304, %v300
    %v389 = vpack.c.b16 %v305, %v301
    %v390 = vpack.c.b16 %v310, %v306
    %v391 = vpack.c.b16 %v311, %v307
    %v392 = vpack.c.b16 %v312, %v308
    %v393 = vpack.c.b16 %v313, %v309
    %v394 = vpack.c.b16 %v318, %v314
    %v395 = vpack.c.b16 %v319, %v315
    %v396 = vpack.c.b16 %v320, %v316
    %v397 = vpack.c.b16 %v321, %v317
    %v398 = vpack.c.b16 %v326, %v322
    %v399 = vpack.c.b16 %v327, %v323
    %v400 = vpack.c.b16 %v328, %v324
    %v401 = vpack.c.b16 %v329, %v325
    %v402 = vpack.c.b16 %v334, %v330
    %v403 = vpack.c.b16 %v335, %v331
    %v404 = vpack.c.b16 %v336, %v332
    %v405 = vpack.c.b16 %v337, %v333
    %v406 = vpack.c.b16 %v342, %v338
    %v407 = vpack.c.b16 %v343, %v339
    %v408 = vpack.c.b16 %v344, %v340
    %v409 = vpack.c.b16 %v345, %v341
    %474 = vmatprep.subr.bf16.mxu0 %v347
    %475 = vmatpush1.bf16.msra.mxu0 %v346
    %476 = vmatprep.subr.bf16.mxu0 %v351
    %477 = vmatpush1.bf16.msra.mxu0 %v350
    %478 = vmatprep.subr.bf16.mxu0 %v355
    %479 = vmatpush1.bf16.msra.mxu0 %v354
    %480 = vmatprep.subr.bf16.mxu0 %v359
    %481 = vmatpush1.bf16.msra.mxu0 %v358
    %482 = vmatprep.subr.bf16.mxu0 %v363
    %483 = vmatpush1.bf16.msra.mxu0 %v362
    %484 = vmatprep.subr.bf16.mxu0 %v367
    %485 = vmatpush1.bf16.msra.mxu0 %v366
    %486 = vmatprep.subr.bf16.mxu0 %v371
    %487 = vmatpush1.bf16.msra.mxu0 %v370
    %488 = vmatprep.subr.bf16.mxu0 %v375
    %489 = vmatpush1.bf16.msra.mxu0 %v374
    %490 = vmatprep.subr.bf16.mxu0 %v379
    %491 = vmatpush1.bf16.msra.mxu0 %v378
    %492 = vmatprep.subr.bf16.mxu0 %v383
    %493 = vmatpush1.bf16.msra.mxu0 %v382
    %494 = vmatprep.subr.bf16.mxu0 %v387
    %495 = vmatpush1.bf16.msra.mxu0 %v386
    %496 = vmatprep.subr.bf16.mxu0 %v391
    %497 = vmatpush1.bf16.msra.mxu0 %v390
    %498 = vmatprep.subr.bf16.mxu0 %v395
    %499 = vmatpush1.bf16.msra.mxu0 %v394
    %500 = vmatprep.subr.bf16.mxu0 %v399
    %501 = vmatpush1.bf16.msra.mxu0 %v398
    %502 = vmatprep.subr.bf16.mxu0 %v403
    %503 = vmatpush1.bf16.msra.mxu0 %v402
    %504 = vmatprep.subr.bf16.mxu0 %v407
    %505 = vmatpush1.bf16.msra.mxu0 %v406
    %506 = vmatprep.mubr.bf16.mxu0 %v151
    %507 = vmatmul.mubr.bf16.gmra.mrb[0].mxu0 %v150
    %v508 = vpop.f32.mrb[0].mxu0
    %v509 = vadd.f32 0.0, %v508
    %v510 = vpop.f32.mrb[0].mxu0
    %v511 = vadd.f32 0.0, %v510
    %v512 = vpop.f32.mrb[0].mxu0
    %v513 = vadd.f32 0.0, %v512
    %v514 = vpop.f32.mrb[0].mxu0
    %v515 = vadd.f32 0.0, %v514
    %516 = vdwg.mxu0
    %517 = vmatprep.subr.bf16.mxu0 %v349
    %518 = vmatpush1.bf16.msra.mxu0 %v348
    %519 = vmatprep.subr.bf16.mxu0 %v353
    %520 = vmatpush1.bf16.msra.mxu0 %v352
    %521 = vmatprep.subr.bf16.mxu0 %v357
    %522 = vmatpush1.bf16.msra.mxu0 %v356
    %523 = vmatprep.subr.bf16.mxu0 %v361
    %524 = vmatpush1.bf16.msra.mxu0 %v360
    %525 = vmatprep.subr.bf16.mxu0 %v365
    %526 = vmatpush1.bf16.msra.mxu0 %v364
    %527 = vmatprep.subr.bf16.mxu0 %v369
    %528 = vmatpush1.bf16.msra.mxu0 %v368
    %529 = vmatprep.subr.bf16.mxu0 %v373
    %530 = vmatpush1.bf16.msra.mxu0 %v372
    %531 = vmatprep.subr.bf16.mxu0 %v377
    %532 = vmatpush1.bf16.msra.mxu0 %v376
    %533 = vmatprep.subr.bf16.mxu0 %v381
    %534 = vmatpush1.bf16.msra.mxu0 %v380
    %535 = vmatprep.subr.bf16.mxu0 %v385
    %536 = vmatpush1.bf16.msra.mxu0 %v384
    %537 = vmatprep.subr.bf16.mxu0 %v389
    %538 = vmatpush1.bf16.msra.mxu0 %v388
    %539 = vmatprep.subr.bf16.mxu0 %v393
    %540 = vmatpush1.bf16.msra.mxu0 %v392
    %541 = vmatprep.subr.bf16.mxu0 %v397
    %542 = vmatpush1.bf16.msra.mxu0 %v396
    %543 = vmatprep.subr.bf16.mxu0 %v401
    %544 = vmatpush1.bf16.msra.mxu0 %v400
    %545 = vmatprep.subr.bf16.mxu0 %v405
    %546 = vmatpush1.bf16.msra.mxu0 %v404
    %547 = vmatprep.subr.bf16.mxu0 %v409
    %548 = vmatpush1.bf16.msra.mxu0 %v408
    %549 = vmatprep.mubr.bf16.mxu0 %v151
    %550 = vmatmul.mubr.bf16.gmra.mrb[0].mxu0 %v150
    %v551 = vpop.f32.mrb[0].mxu0
    %v552 = vadd.f32 0.0, %v551
    %v553 = vpop.f32.mrb[0].mxu0
    %v554 = vadd.f32 0.0, %v553
    %v555 = vpop.f32.mrb[0].mxu0
    %v556 = vadd.f32 0.0, %v555
    %v557 = vpop.f32.mrb[0].mxu0
    %v558 = vadd.f32 0.0, %v557
    %559 = vdwg.mxu0
    %v560 = vmax.f32 %v509, 0.0
    %v561 = vmax.f32 %v511, 0.0
    %v562 = vmax.f32 %v552, 0.0
    %v563 = vmax.f32 %v554, 0.0
    %v564 = vmax.f32 %v513, 0.0
    %v565 = vmax.f32 %v515, 0.0
    %v566 = vmax.f32 %v556, 0.0
    %v567 = vmax.f32 %v558, 0.0
    %v568 = vpack.c.bf16 %v564, %v560
    %v569 = vpack.c.bf16 %v565, %v561
    %v570 = vpack.c.bf16 %v566, %v562
    %v571 = vpack.c.bf16 %v567, %v563
    %v572 = vld [vmem:[#allocation4] sm:$0xff]
    %v573 = vld [vmem:[#allocation4 + $0x8] sm:$0xf]
    %v574 = vld [vmem:[#allocation4 + $0xc] sm:$0xff]
    %v575 = vld [vmem:[#allocation4 + $0x14] sm:$0xf]
    %v576 = vld [vmem:[#allocation4 + $0x18] sm:$0xff]
    %v577 = vld [vmem:[#allocation4 + $0x20] sm:$0xf]
    %v578 = vld [vmem:[#allocation4 + $0x24] sm:$0xff]
    %v579 = vld [vmem:[#allocation4 + $0x2c] sm:$0xf]
    %v580 = vld [vmem:[#allocation4 + $0x30] sm:$0xff]
    %v581 = vld [vmem:[#allocation4 + $0x38] sm:$0xf]
    %v582 = vld [vmem:[#allocation4 + $0x3c] sm:$0xff]
    %v583 = vld [vmem:[#allocation4 + $0x44] sm:$0xf]
    %v584 = vld [vmem:[#allocation4 + $0x48] sm:$0xff]
    %v585 = vld [vmem:[#allocation4 + $0x50] sm:$0xf]
    %v586 = vld [vmem:[#allocation4 + $0x54] sm:$0xff]
    %v587 = vld [vmem:[#allocation4 + $0x5c] sm:$0xf]
    %v588 = vld [vmem:[#allocation4 + $0x60] sm:$0xff]
    %v589 = vld [vmem:[#allocation4 + $0x68] sm:$0xf]
    %v590 = vld [vmem:[#allocation4 + $0x6c] sm:$0xff]
    %v591 = vld [vmem:[#allocation4 + $0x74] sm:$0xf]
    %v592 = vld [vmem:[#allocation4 + $0x78] sm:$0xff]
    %v593 = vld [vmem:[#allocation4 + $0x80] sm:$0xf]
    %v594 = vld [vmem:[#allocation4 + $0x84] sm:$0xff]
    %v595 = vld [vmem:[#allocation4 + $0x8c] sm:$0xf]
    %v596 = vld [vmem:[#allocation4 + $0x90] sm:$0xff]
    %v597 = vld [vmem:[#allocation4 + $0x98] sm:$0xf]
    %v598 = vld [vmem:[#allocation4 + $0x9c] sm:$0xff]
    %v599 = vld [vmem:[#allocation4 + $0xa4] sm:$0xf]
    %v600 = vld [vmem:[#allocation4 + $0xa8] sm:$0xff]
    %v601 = vld [vmem:[#allocation4 + $0xb0] sm:$0xf]
    %v602 = vld [vmem:[#allocation4 + $0xb4] sm:$0xff]
    %v603 = vld [vmem:[#allocation4 + $0xbc] sm:$0xf]
    %v604 = vld [vmem:[#allocation4 + $0xc0] sm:$0xff]
    %v605 = vld [vmem:[#allocation4 + $0xc8] sm:$0xf]
    %v606 = vld [vmem:[#allocation4 + $0xcc] sm:$0xff]
    %v607 = vld [vmem:[#allocation4 + $0xd4] sm:$0xf]
    %v608 = vld [vmem:[#allocation4 + $0xd8] sm:$0xff]
    %v609 = vld [vmem:[#allocation4 + $0xe0] sm:$0xf]
    %v610 = vld [vmem:[#allocation4 + $0xe4] sm:$0xff]
    %v611 = vld [vmem:[#allocation4 + $0xec] sm:$0xf]
    %v612 = vld [vmem:[#allocation4 + $0xf0] sm:$0xff]
    %v613 = vld [vmem:[#allocation4 + $0xf8] sm:$0xf]
    %v614 = vld [vmem:[#allocation4 + $0xfc] sm:$0xff]
    %v615 = vld [vmem:[#allocation4 + $0x104] sm:$0xf]
    %v616 = vld [vmem:[#allocation4 + $0x108] sm:$0xff]
    %v617 = vld [vmem:[#allocation4 + $0x110] sm:$0xf]
    %v618 = vld [vmem:[#allocation4 + $0x114] sm:$0xff]
    %v619 = vld [vmem:[#allocation4 + $0x11c] sm:$0xf]
    %v620 = vld [vmem:[#allocation4 + $0x120] sm:$0xff]
    %v621 = vld [vmem:[#allocation4 + $0x128] sm:$0xf]
    %v622 = vld [vmem:[#allocation4 + $0x12c] sm:$0xff]
    %v623 = vld [vmem:[#allocation4 + $0x134] sm:$0xf]
    %v624 = vld [vmem:[#allocation4 + $0x138] sm:$0xff]
    %v625 = vld [vmem:[#allocation4 + $0x140] sm:$0xf]
    %v626 = vld [vmem:[#allocation4 + $0x144] sm:$0xff]
    %v627 = vld [vmem:[#allocation4 + $0x14c] sm:$0xf]
    %v628 = vld [vmem:[#allocation4 + $0x150] sm:$0xff]
    %v629 = vld [vmem:[#allocation4 + $0x158] sm:$0xf]
    %v630 = vld [vmem:[#allocation4 + $0x15c] sm:$0xff]
    %v631 = vld [vmem:[#allocation4 + $0x164] sm:$0xf]
    %v632 = vld [vmem:[#allocation4 + $0x168] sm:$0xff]
    %v633 = vld [vmem:[#allocation4 + $0x170] sm:$0xf]
    %v634 = vld [vmem:[#allocation4 + $0x174] sm:$0xff]
    %v635 = vld [vmem:[#allocation4 + $0x17c] sm:$0xf]
    %v636 = vld [vmem:[#allocation4 + $0x180] sm:$0xff]
    %v637 = vld [vmem:[#allocation4 + $0x188] sm:$0xf]
    %v638 = vld [vmem:[#allocation4 + $0x18c] sm:$0xff]
    %v639 = vld [vmem:[#allocation4 + $0x194] sm:$0xf]
    %v640 = vld [vmem:[#allocation4 + $0x198] sm:$0xff]
    %v641 = vld [vmem:[#allocation4 + $0x1a0] sm:$0xf]
    %v642 = vld [vmem:[#allocation4 + $0x1a4] sm:$0xff]
    %v643 = vld [vmem:[#allocation4 + $0x1ac] sm:$0xf]
    %v644 = vld [vmem:[#allocation4 + $0x1b0] sm:$0xff]
    %v645 = vld [vmem:[#allocation4 + $0x1b8] sm:$0xf]
    %v646 = vld [vmem:[#allocation4 + $0x1bc] sm:$0xff]
    %v647 = vld [vmem:[#allocation4 + $0x1c4] sm:$0xf]
    %v648 = vld [vmem:[#allocation4 + $0x1c8] sm:$0xff]
    %v649 = vld [vmem:[#allocation4 + $0x1d0] sm:$0xf]
    %v650 = vld [vmem:[#allocation4 + $0x1d4] sm:$0xff]
    %v651 = vld [vmem:[#allocation4 + $0x1dc] sm:$0xf]
    %v652 = vld [vmem:[#allocation4 + $0x1e0] sm:$0xff]
    %v653 = vld [vmem:[#allocation4 + $0x1e8] sm:$0xf]
    %v654 = vld [vmem:[#allocation4 + $0x1ec] sm:$0xff]
    %v655 = vld [vmem:[#allocation4 + $0x1f4] sm:$0xf]
    %v656 = vld [vmem:[#allocation4 + $0x1f8] sm:$0xff]
    %v657 = vld [vmem:[#allocation4 + $0x200] sm:$0xf]
    %v658 = vld [vmem:[#allocation4 + $0x204] sm:$0xff]
    %v659 = vld [vmem:[#allocation4 + $0x20c] sm:$0xf]
    %v660 = vld [vmem:[#allocation4 + $0x210] sm:$0xff]
    %v661 = vld [vmem:[#allocation4 + $0x218] sm:$0xf]
    %v662 = vld [vmem:[#allocation4 + $0x21c] sm:$0xff]
    %v663 = vld [vmem:[#allocation4 + $0x224] sm:$0xf]
    %v664 = vld [vmem:[#allocation4 + $0x228] sm:$0xff]
    %v665 = vld [vmem:[#allocation4 + $0x230] sm:$0xf]
    %v666 = vld [vmem:[#allocation4 + $0x234] sm:$0xff]
    %v667 = vld [vmem:[#allocation4 + $0x23c] sm:$0xf]
    %v668 = vld [vmem:[#allocation4 + $0x240] sm:$0xff]
    %v669 = vld [vmem:[#allocation4 + $0x248] sm:$0xf]
    %v670 = vld [vmem:[#allocation4 + $0x24c] sm:$0xff]
    %v671 = vld [vmem:[#allocation4 + $0x254] sm:$0xf]
    %v672 = vld [vmem:[#allocation4 + $0x258] sm:$0xff]
    %v673 = vld [vmem:[#allocation4 + $0x260] sm:$0xf]
    %v674 = vld [vmem:[#allocation4 + $0x264] sm:$0xff]
    %v675 = vld [vmem:[#allocation4 + $0x26c] sm:$0xf]
    %v676 = vld [vmem:[#allocation4 + $0x270] sm:$0xff]
    %v677 = vld [vmem:[#allocation4 + $0x278] sm:$0xf]
    %v678 = vld [vmem:[#allocation4 + $0x27c] sm:$0xff]
    %v679 = vld [vmem:[#allocation4 + $0x284] sm:$0xf]
    %v680 = vld [vmem:[#allocation4 + $0x288] sm:$0xff]
    %v681 = vld [vmem:[#allocation4 + $0x290] sm:$0xf]
    %v682 = vld [vmem:[#allocation4 + $0x294] sm:$0xff]
    %v683 = vld [vmem:[#allocation4 + $0x29c] sm:$0xf]
    %v684 = vld [vmem:[#allocation4 + $0x2a0] sm:$0xff]
    %v685 = vld [vmem:[#allocation4 + $0x2a8] sm:$0xf]
    %v686 = vld [vmem:[#allocation4 + $0x2ac] sm:$0xff]
    %v687 = vld [vmem:[#allocation4 + $0x2b4] sm:$0xf]
    %v688 = vld [vmem:[#allocation4 + $0x2b8] sm:$0xff]
    %v689 = vld [vmem:[#allocation4 + $0x2c0] sm:$0xf]
    %v690 = vld [vmem:[#allocation4 + $0x2c4] sm:$0xff]
    %v691 = vld [vmem:[#allocation4 + $0x2cc] sm:$0xf]
    %v692 = vld [vmem:[#allocation4 + $0x2d0] sm:$0xff]
    %v693 = vld [vmem:[#allocation4 + $0x2d8] sm:$0xf]
    %v694 = vld [vmem:[#allocation4 + $0x2dc] sm:$0xff]
    %v695 = vld [vmem:[#allocation4 + $0x2e4] sm:$0xf]
    %v696 = vld [vmem:[#allocation4 + $0x2e8] sm:$0xff]
    %v697 = vld [vmem:[#allocation4 + $0x2f0] sm:$0xf]
    %v698 = vld [vmem:[#allocation4 + $0x2f4] sm:$0xff]
    %v699 = vld [vmem:[#allocation4 + $0x2fc] sm:$0xf]
    %v828 = vunpack.c.l.b16 %v572
    %v829 = vunpack.c.h.b16 %v572
    %v830 = vunpack.c.l.b16 %v573
    %v831 = vunpack.c.l.b16 %v574
    %v832 = vunpack.c.h.b16 %v574
    %v833 = vunpack.c.l.b16 %v575
    %v834 = vunpack.c.l.b16 %v576
    %v835 = vunpack.c.h.b16 %v576
    %v836 = vunpack.c.l.b16 %v577
    %v837 = vunpack.c.l.b16 %v578
    %v838 = vunpack.c.h.b16 %v578
    %v839 = vunpack.c.l.b16 %v579
    %v840 = vunpack.c.l.b16 %v580
    %v841 = vunpack.c.h.b16 %v580
    %v842 = vunpack.c.l.b16 %v581
    %v843 = vunpack.c.l.b16 %v582
    %v844 = vunpack.c.h.b16 %v582
    %v845 = vunpack.c.l.b16 %v583
    %v846 = vunpack.c.l.b16 %v584
    %v847 = vunpack.c.h.b16 %v584
    %v848 = vunpack.c.l.b16 %v585
    %v849 = vunpack.c.l.b16 %v586
    %v850 = vunpack.c.h.b16 %v586
    %v851 = vunpack.c.l.b16 %v587
    %v852 = vunpack.c.l.b16 %v588
    %v853 = vunpack.c.h.b16 %v588
    %v854 = vunpack.c.l.b16 %v589
    %v855 = vunpack.c.l.b16 %v590
    %v856 = vunpack.c.h.b16 %v590
    %v857 = vunpack.c.l.b16 %v591
    %v858 = vunpack.c.l.b16 %v592
    %v859 = vunpack.c.h.b16 %v592
    %v860 = vunpack.c.l.b16 %v593
    %v861 = vunpack.c.l.b16 %v594
    %v862 = vunpack.c.h.b16 %v594
    %v863 = vunpack.c.l.b16 %v595
    %v864 = vunpack.c.l.b16 %v596
    %v865 = vunpack.c.h.b16 %v596
    %v866 = vunpack.c.l.b16 %v597
    %v867 = vunpack.c.l.b16 %v598
    %v868 = vunpack.c.h.b16 %v598
    %v869 = vunpack.c.l.b16 %v599
    %v870 = vunpack.c.l.b16 %v600
    %v871 = vunpack.c.h.b16 %v600
    %v872 = vunpack.c.l.b16 %v601
    %v873 = vunpack.c.l.b16 %v602
    %v874 = vunpack.c.h.b16 %v602
    %v875 = vunpack.c.l.b16 %v603
    %v876 = vunpack.c.l.b16 %v604
    %v877 = vunpack.c.h.b16 %v604
    %v878 = vunpack.c.l.b16 %v605
    %v879 = vunpack.c.l.b16 %v606
    %v880 = vunpack.c.h.b16 %v606
    %v881 = vunpack.c.l.b16 %v607
    %v882 = vunpack.c.l.b16 %v608
    %v883 = vunpack.c.h.b16 %v608
    %v884 = vunpack.c.l.b16 %v609
    %v885 = vunpack.c.l.b16 %v610
    %v886 = vunpack.c.h.b16 %v610
    %v887 = vunpack.c.l.b16 %v611
    %v888 = vunpack.c.l.b16 %v612
    %v889 = vunpack.c.h.b16 %v612
    %v890 = vunpack.c.l.b16 %v613
    %v891 = vunpack.c.l.b16 %v614
    %v892 = vunpack.c.h.b16 %v614
    %v893 = vunpack.c.l.b16 %v615
    %v894 = vunpack.c.l.b16 %v616
    %v895 = vunpack.c.h.b16 %v616
    %v896 = vunpack.c.l.b16 %v617
    %v897 = vunpack.c.l.b16 %v618
    %v898 = vunpack.c.h.b16 %v618
    %v899 = vunpack.c.l.b16 %v619
    %v900 = vunpack.c.l.b16 %v620
    %v901 = vunpack.c.h.b16 %v620
    %v902 = vunpack.c.l.b16 %v621
    %v903 = vunpack.c.l.b16 %v622
    %v904 = vunpack.c.h.b16 %v622
    %v905 = vunpack.c.l.b16 %v623
    %v906 = vunpack.c.l.b16 %v624
    %v907 = vunpack.c.h.b16 %v624
    %v908 = vunpack.c.l.b16 %v625
    %v909 = vunpack.c.l.b16 %v626
    %v910 = vunpack.c.h.b16 %v626
    %v911 = vunpack.c.l.b16 %v627
    %v912 = vunpack.c.l.b16 %v628
    %v913 = vunpack.c.h.b16 %v628
    %v914 = vunpack.c.l.b16 %v629
    %v915 = vunpack.c.l.b16 %v630
    %v916 = vunpack.c.h.b16 %v630
    %v917 = vunpack.c.l.b16 %v631
    %v918 = vunpack.c.l.b16 %v632
    %v919 = vunpack.c.h.b16 %v632
    %v920 = vunpack.c.l.b16 %v633
    %v921 = vunpack.c.l.b16 %v634
    %v922 = vunpack.c.h.b16 %v634
    %v923 = vunpack.c.l.b16 %v635
    %v924 = vunpack.c.l.b16 %v636
    %v925 = vunpack.c.h.b16 %v636
    %v926 = vunpack.c.l.b16 %v637
    %v927 = vunpack.c.l.b16 %v638
    %v928 = vunpack.c.h.b16 %v638
    %v929 = vunpack.c.l.b16 %v639
    %v930 = vunpack.c.l.b16 %v640
    %v931 = vunpack.c.h.b16 %v640
    %v932 = vunpack.c.l.b16 %v641
    %v933 = vunpack.c.l.b16 %v642
    %v934 = vunpack.c.h.b16 %v642
    %v935 = vunpack.c.l.b16 %v643
    %v936 = vunpack.c.l.b16 %v644
    %v937 = vunpack.c.h.b16 %v644
    %v938 = vunpack.c.l.b16 %v645
    %v939 = vunpack.c.l.b16 %v646
    %v940 = vunpack.c.h.b16 %v646
    %v941 = vunpack.c.l.b16 %v647
    %v942 = vunpack.c.l.b16 %v648
    %v943 = vunpack.c.h.b16 %v648
    %v944 = vunpack.c.l.b16 %v649
    %v945 = vunpack.c.l.b16 %v650
    %v946 = vunpack.c.h.b16 %v650
    %v947 = vunpack.c.l.b16 %v651
    %v948 = vunpack.c.l.b16 %v652
    %v949 = vunpack.c.h.b16 %v652
    %v950 = vunpack.c.l.b16 %v653
    %v951 = vunpack.c.l.b16 %v654
    %v952 = vunpack.c.h.b16 %v654
    %v953 = vunpack.c.l.b16 %v655
    %v954 = vunpack.c.l.b16 %v656
    %v955 = vunpack.c.h.b16 %v656
    %v956 = vunpack.c.l.b16 %v657
    %v957 = vunpack.c.l.b16 %v658
    %v958 = vunpack.c.h.b16 %v658
    %v959 = vunpack.c.l.b16 %v659
    %v960 = vunpack.c.l.b16 %v660
    %v961 = vunpack.c.h.b16 %v660
    %v962 = vunpack.c.l.b16 %v661
    %v963 = vunpack.c.l.b16 %v662
    %v964 = vunpack.c.h.b16 %v662
    %v965 = vunpack.c.l.b16 %v663
    %v966 = vunpack.c.l.b16 %v664
    %v967 = vunpack.c.h.b16 %v664
    %v968 = vunpack.c.l.b16 %v665
    %v969 = vunpack.c.l.b16 %v666
    %v970 = vunpack.c.h.b16 %v666
    %v971 = vunpack.c.l.b16 %v667
    %v972 = vunpack.c.l.b16 %v668
    %v973 = vunpack.c.h.b16 %v668
    %v974 = vunpack.c.l.b16 %v669
    %v975 = vunpack.c.l.b16 %v670
    %v976 = vunpack.c.h.b16 %v670
    %v977 = vunpack.c.l.b16 %v671
    %v978 = vunpack.c.l.b16 %v672
    %v979 = vunpack.c.h.b16 %v672
    %v980 = vunpack.c.l.b16 %v673
    %v981 = vunpack.c.l.b16 %v674
    %v982 = vunpack.c.h.b16 %v674
    %v983 = vunpack.c.l.b16 %v675
    %v984 = vunpack.c.l.b16 %v676
    %v985 = vunpack.c.h.b16 %v676
    %v986 = vunpack.c.l.b16 %v677
    %v987 = vunpack.c.l.b16 %v678
    %v988 = vunpack.c.h.b16 %v678
    %v989 = vunpack.c.l.b16 %v679
    %v990 = vunpack.c.l.b16 %v680
    %v991 = vunpack.c.h.b16 %v680
    %v992 = vunpack.c.l.b16 %v681
    %v993 = vunpack.c.l.b16 %v682
    %v994 = vunpack.c.h.b16 %v682
    %v995 = vunpack.c.l.b16 %v683
    %v996 = vunpack.c.l.b16 %v684
    %v997 = vunpack.c.h.b16 %v684
    %v998 = vunpack.c.l.b16 %v685
    %v999 = vunpack.c.l.b16 %v686
    %v1000 = vunpack.c.h.b16 %v686
    %v1001 = vunpack.c.l.b16 %v687
    %v1002 = vunpack.c.l.b16 %v688
    %v1003 = vunpack.c.h.b16 %v688
    %v1004 = vunpack.c.l.b16 %v689
    %v1005 = vunpack.c.l.b16 %v690
    %v1006 = vunpack.c.h.b16 %v690
    %v1007 = vunpack.c.l.b16 %v691
    %v1008 = vunpack.c.l.b16 %v692
    %v1009 = vunpack.c.h.b16 %v692
    %v1010 = vunpack.c.l.b16 %v693
    %v1011 = vunpack.c.l.b16 %v694
    %v1012 = vunpack.c.h.b16 %v694
    %v1013 = vunpack.c.l.b16 %v695
    %v1014 = vunpack.c.l.b16 %v696
    %v1015 = vunpack.c.h.b16 %v696
    %v1016 = vunpack.c.l.b16 %v697
    %v1017 = vunpack.c.l.b16 %v698
    %v1018 = vunpack.c.h.b16 %v698
    %v1019 = vunpack.c.l.b16 %v699
    %v1020 = vpack.c.b16 %v831, %v828
    %v1021 = vpack.c.b16 %v832, %v829
    %v1022 = vpack.c.b16 %v833, %v830
    %v1023 = vpack.c.b16 %v837, %v834
    %v1024 = vpack.c.b16 %v838, %v835
    %v1025 = vpack.c.b16 %v839, %v836
    %v1026 = vpack.c.b16 %v843, %v840
    %v1027 = vpack.c.b16 %v844, %v841
    %v1028 = vpack.c.b16 %v845, %v842
    %v1029 = vpack.c.b16 %v849, %v846
    %v1030 = vpack.c.b16 %v850, %v847
    %v1031 = vpack.c.b16 %v851, %v848
    %v1032 = vpack.c.b16 %v855, %v852
    %v1033 = vpack.c.b16 %v856, %v853
    %v1034 = vpack.c.b16 %v857, %v854
    %v1035 = vpack.c.b16 %v861, %v858
    %v1036 = vpack.c.b16 %v862, %v859
    %v1037 = vpack.c.b16 %v863, %v860
    %v1038 = vpack.c.b16 %v867, %v864
    %v1039 = vpack.c.b16 %v868, %v865
    %v1040 = vpack.c.b16 %v869, %v866
    %v1041 = vpack.c.b16 %v873, %v870
    %v1042 = vpack.c.b16 %v874, %v871
    %v1043 = vpack.c.b16 %v875, %v872
    %v1044 = vpack.c.b16 %v879, %v876
    %v1045 = vpack.c.b16 %v880, %v877
    %v1046 = vpack.c.b16 %v881, %v878
    %v1047 = vpack.c.b16 %v885, %v882
    %v1048 = vpack.c.b16 %v886, %v883
    %v1049 = vpack.c.b16 %v887, %v884
    %v1050 = vpack.c.b16 %v891, %v888
    %v1051 = vpack.c.b16 %v892, %v889
    %v1052 = vpack.c.b16 %v893, %v890
    %v1053 = vpack.c.b16 %v897, %v894
    %v1054 = vpack.c.b16 %v898, %v895
    %v1055 = vpack.c.b16 %v899, %v896
    %v1056 = vpack.c.b16 %v903, %v900
    %v1057 = vpack.c.b16 %v904, %v901
    %v1058 = vpack.c.b16 %v905, %v902
    %v1059 = vpack.c.b16 %v909, %v906
    %v1060 = vpack.c.b16 %v910, %v907
    %v1061 = vpack.c.b16 %v911, %v908
    %v1062 = vpack.c.b16 %v915, %v912
    %v1063 = vpack.c.b16 %v916, %v913
    %v1064 = vpack.c.b16 %v917, %v914
    %v1065 = vpack.c.b16 %v921, %v918
    %v1066 = vpack.c.b16 %v922, %v919
    %v1067 = vpack.c.b16 %v923, %v920
    %v1068 = vpack.c.b16 %v927, %v924
    %v1069 = vpack.c.b16 %v928, %v925
    %v1070 = vpack.c.b16 %v929, %v926
    %v1071 = vpack.c.b16 %v933, %v930
    %v1072 = vpack.c.b16 %v934, %v931
    %v1073 = vpack.c.b16 %v935, %v932
    %v1074 = vpack.c.b16 %v939, %v936
    %v1075 = vpack.c.b16 %v940, %v937
    %v1076 = vpack.c.b16 %v941, %v938
    %v1077 = vpack.c.b16 %v945, %v942
    %v1078 = vpack.c.b16 %v946, %v943
    %v1079 = vpack.c.b16 %v947, %v944
    %v1080 = vpack.c.b16 %v951, %v948
    %v1081 = vpack.c.b16 %v952, %v949
    %v1082 = vpack.c.b16 %v953, %v950
    %v1083 = vpack.c.b16 %v957, %v954
    %v1084 = vpack.c.b16 %v958, %v955
    %v1085 = vpack.c.b16 %v959, %v956
    %v1086 = vpack.c.b16 %v963, %v960
    %v1087 = vpack.c.b16 %v964, %v961
    %v1088 = vpack.c.b16 %v965, %v962
    %v1089 = vpack.c.b16 %v969, %v966
    %v1090 = vpack.c.b16 %v970, %v967
    %v1091 = vpack.c.b16 %v971, %v968
    %v1092 = vpack.c.b16 %v975, %v972
    %v1093 = vpack.c.b16 %v976, %v973
    %v1094 = vpack.c.b16 %v977, %v974
    %v1095 = vpack.c.b16 %v981, %v978
    %v1096 = vpack.c.b16 %v982, %v979
    %v1097 = vpack.c.b16 %v983, %v980
    %v1098 = vpack.c.b16 %v987, %v984
    %v1099 = vpack.c.b16 %v988, %v985
    %v1100 = vpack.c.b16 %v989, %v986
    %v1101 = vpack.c.b16 %v993, %v990
    %v1102 = vpack.c.b16 %v994, %v991
    %v1103 = vpack.c.b16 %v995, %v992
    %v1104 = vpack.c.b16 %v999, %v996
    %v1105 = vpack.c.b16 %v1000, %v997
    %v1106 = vpack.c.b16 %v1001, %v998
    %v1107 = vpack.c.b16 %v1005, %v1002
    %v1108 = vpack.c.b16 %v1006, %v1003
    %v1109 = vpack.c.b16 %v1007, %v1004
    %v1110 = vpack.c.b16 %v1011, %v1008
    %v1111 = vpack.c.b16 %v1012, %v1009
    %v1112 = vpack.c.b16 %v1013, %v1010
    %v1113 = vpack.c.b16 %v1017, %v1014
    %v1114 = vpack.c.b16 %v1018, %v1015
    %v1115 = vpack.c.b16 %v1019, %v1016
    %1212 = vmatprep.subr.bf16.mxu0 %v1021
    %1213 = vmatpush1.bf16.msra.mxu0 %v1020
    %1214 = vmatprep.subr.bf16.mxu0 %v1024
    %1215 = vmatpush1.bf16.msra.mxu0 %v1023
    %1216 = vmatprep.subr.bf16.mxu0 %v1027
    %1217 = vmatpush1.bf16.msra.mxu0 %v1026
    %1218 = vmatprep.subr.bf16.mxu0 %v1030
    %1219 = vmatpush1.bf16.msra.mxu0 %v1029
    %1220 = vmatprep.subr.bf16.mxu0 %v1033
    %1221 = vmatpush1.bf16.msra.mxu0 %v1032
    %1222 = vmatprep.subr.bf16.mxu0 %v1036
    %1223 = vmatpush1.bf16.msra.mxu0 %v1035
    %1224 = vmatprep.subr.bf16.mxu0 %v1039
    %1225 = vmatpush1.bf16.msra.mxu0 %v1038
    %1226 = vmatprep.subr.bf16.mxu0 %v1042
    %1227 = vmatpush1.bf16.msra.mxu0 %v1041
    %1228 = vmatprep.subr.bf16.mxu0 %v1045
    %1229 = vmatpush1.bf16.msra.mxu0 %v1044
    %1230 = vmatprep.subr.bf16.mxu0 %v1048
    %1231 = vmatpush1.bf16.msra.mxu0 %v1047
    %1232 = vmatprep.subr.bf16.mxu0 %v1051
    %1233 = vmatpush1.bf16.msra.mxu0 %v1050
    %1234 = vmatprep.subr.bf16.mxu0 %v1054
    %1235 = vmatpush1.bf16.msra.mxu0 %v1053
    %1236 = vmatprep.subr.bf16.mxu0 %v1057
    %1237 = vmatpush1.bf16.msra.mxu0 %v1056
    %1238 = vmatprep.subr.bf16.mxu0 %v1060
    %1239 = vmatpush1.bf16.msra.mxu0 %v1059
    %1240 = vmatprep.subr.bf16.mxu0 %v1063
    %1241 = vmatpush1.bf16.msra.mxu0 %v1062
    %1242 = vmatprep.subr.bf16.mxu0 %v1066
    %1243 = vmatpush1.bf16.msra.mxu0 %v1065
    %1244 = vmatprep.mubr.bf16.mxu0 %v569
    %1245 = vmatmul.mubr.bf16.gmra.mrb[0].mxu0 %v568
    %v1246 = vpop.f32.mrb[0].mxu0
    %v1247 = vadd.f32 0.0, %v1246
    %v1248 = vpop.f32.mrb[0].mxu0
    %v1249 = vadd.f32 0.0, %v1248
    %v1250 = vpop.f32.mrb[0].mxu0
    %v1251 = vadd.f32 0.0, %v1250
    %v1252 = vpop.f32.mrb[0].mxu0
    %v1253 = vadd.f32 0.0, %v1252
    %1254 = vdwg.mxu0
    %1255 = vmatprep.subr.bf16.mxu0 %v1069
    %1256 = vmatpush1.bf16.msra.mxu0 %v1068
    %1257 = vmatprep.subr.bf16.mxu0 %v1072
    %1258 = vmatpush1.bf16.msra.mxu0 %v1071
    %1259 = vmatprep.subr.bf16.mxu0 %v1075
    %1260 = vmatpush1.bf16.msra.mxu0 %v1074
    %1261 = vmatprep.subr.bf16.mxu0 %v1078
    %1262 = vmatpush1.bf16.msra.mxu0 %v1077
    %1263 = vmatprep.subr.bf16.mxu0 %v1081
    %1264 = vmatpush1.bf16.msra.mxu0 %v1080
    %1265 = vmatprep.subr.bf16.mxu0 %v1084
    %1266 = vmatpush1.bf16.msra.mxu0 %v1083
    %1267 = vmatprep.subr.bf16.mxu0 %v1087
    %1268 = vmatpush1.bf16.msra.mxu0 %v1086
    %1269 = vmatprep.subr.bf16.mxu0 %v1090
    %1270 = vmatpush1.bf16.msra.mxu0 %v1089
    %1271 = vmatprep.subr.bf16.mxu0 %v1093
    %1272 = vmatpush1.bf16.msra.mxu0 %v1092
    %1273 = vmatprep.subr.bf16.mxu0 %v1096
    %1274 = vmatpush1.bf16.msra.mxu0 %v1095
    %1275 = vmatprep.subr.bf16.mxu0 %v1099
    %1276 = vmatpush1.bf16.msra.mxu0 %v1098
    %1277 = vmatprep.subr.bf16.mxu0 %v1102
    %1278 = vmatpush1.bf16.msra.mxu0 %v1101
    %1279 = vmatprep.subr.bf16.mxu0 %v1105
    %1280 = vmatpush1.bf16.msra.mxu0 %v1104
    %1281 = vmatprep.subr.bf16.mxu0 %v1108
    %1282 = vmatpush1.bf16.msra.mxu0 %v1107
    %1283 = vmatprep.subr.bf16.mxu0 %v1111
    %1284 = vmatpush1.bf16.msra.mxu0 %v1110
    %1285 = vmatprep.subr.bf16.mxu0 %v1114
    %1286 = vmatpush1.bf16.msra.mxu0 %v1113
    %1287 = vmatprep.mubr.bf16.mxu0 %v571
    %1288 = vmatmul.mubr.bf16.gmra.mrb[0].mxu0 %v570
    %v1289 = vpop.f32.mrb[0].mxu0
    %v1290 = vadd.f32 %v1247, %v1289
    %v1291 = vpop.f32.mrb[0].mxu0
    %v1292 = vadd.f32 %v1249, %v1291
    %v1293 = vpop.f32.mrb[0].mxu0
    %v1294 = vadd.f32 %v1251, %v1293
    %v1295 = vpop.f32.mrb[0].mxu0
    %v1296 = vadd.f32 %v1253, %v1295
    %1297 = vdwg.mxu0
    %1298 = vmatprep.subr.bf16.mxu0 0
    %1299 = vmatpush1.bf16.msra.mxu0 %v1022
    %1300 = vmatprep.subr.bf16.mxu0 0
    %1301 = vmatpush1.bf16.msra.mxu0 %v1025
    %1302 = vmatprep.subr.bf16.mxu0 0
    %1303 = vmatpush1.bf16.msra.mxu0 %v1028
    %1304 = vmatprep.subr.bf16.mxu0 0
    %1305 = vmatpush1.bf16.msra.mxu0 %v1031
    %1306 = vmatprep.subr.bf16.mxu0 0
    %1307 = vmatpush1.bf16.msra.mxu0 %v1034
    %1308 = vmatprep.subr.bf16.mxu0 0
    %1309 = vmatpush1.bf16.msra.mxu0 %v1037
    %1310 = vmatprep.subr.bf16.mxu0 0
    %1311 = vmatpush1.bf16.msra.mxu0 %v1040
    %1312 = vmatprep.subr.bf16.mxu0 0
    %1313 = vmatpush1.bf16.msra.mxu0 %v1043
    %1314 = vmatprep.subr.bf16.mxu0 0
    %1315 = vmatpush1.bf16.msra.mxu0 %v1046
    %1316 = vmatprep.subr.bf16.mxu0 0
    %1317 = vmatpush1.bf16.msra.mxu0 %v1049
    %1318 = vmatprep.subr.bf16.mxu0 0
    %1319 = vmatpush1.bf16.msra.mxu0 %v1052
    %1320 = vmatprep.subr.bf16.mxu0 0
    %1321 = vmatpush1.bf16.msra.mxu0 %v1055
    %1322 = vmatprep.subr.bf16.mxu0 0
    %1323 = vmatpush1.bf16.msra.mxu0 %v1058
    %1324 = vmatprep.subr.bf16.mxu0 0
    %1325 = vmatpush1.bf16.msra.mxu0 %v1061
    %1326 = vmatprep.subr.bf16.mxu0 0
    %1327 = vmatpush1.bf16.msra.mxu0 %v1064
    %1328 = vmatprep.subr.bf16.mxu0 0
    %1329 = vmatpush1.bf16.msra.mxu0 %v1067
    %1330 = vmatprep.mubr.bf16.mxu0 %v569
    %1331 = vmatmul.mubr.bf16.gmra.mrb[0].mxu0 %v568
    %v1332 = vpop.f32.mrb[0].mxu0
    %v1333 = vadd.f32 0.0, %v1332
    %v1334 = vpop.f32.mrb[0].mxu0
    %v1335 = vpop.f32.mrb[0].mxu0
    %v1336 = vadd.f32 0.0, %v1335
    %v1337 = vpop.f32.mrb[0].mxu0
    %1338 = vdwg.mxu0
    %1339 = vmatprep.subr.bf16.mxu0 0
    %1340 = vmatpush1.bf16.msra.mxu0 %v1070
    %1341 = vmatprep.subr.bf16.mxu0 0
    %1342 = vmatpush1.bf16.msra.mxu0 %v1073
    %1343 = vmatprep.subr.bf16.mxu0 0
    %1344 = vmatpush1.bf16.msra.mxu0 %v1076
    %1345 = vmatprep.subr.bf16.mxu0 0
    %1346 = vmatpush1.bf16.msra.mxu0 %v1079
    %1347 = vmatprep.subr.bf16.mxu0 0
    %1348 = vmatpush1.bf16.msra.mxu0 %v1082
    %1349 = vmatprep.subr.bf16.mxu0 0
    %1350 = vmatpush1.bf16.msra.mxu0 %v1085
    %1351 = vmatprep.subr.bf16.mxu0 0
    %1352 = vmatpush1.bf16.msra.mxu0 %v1088
    %1353 = vmatprep.subr.bf16.mxu0 0
    %1354 = vmatpush1.bf16.msra.mxu0 %v1091
    %1355 = vmatprep.subr.bf16.mxu0 0
    %1356 = vmatpush1.bf16.msra.mxu0 %v1094
    %1357 = vmatprep.subr.bf16.mxu0 0
    %1358 = vmatpush1.bf16.msra.mxu0 %v1097
    %1359 = vmatprep.subr.bf16.mxu0 0
    %1360 = vmatpush1.bf16.msra.mxu0 %v1100
    %1361 = vmatprep.subr.bf16.mxu0 0
    %1362 = vmatpush1.bf16.msra.mxu0 %v1103
    %1363 = vmatprep.subr.bf16.mxu0 0
    %1364 = vmatpush1.bf16.msra.mxu0 %v1106
    %1365 = vmatprep.subr.bf16.mxu0 0
    %1366 = vmatpush1.bf16.msra.mxu0 %v1109
    %1367 = vmatprep.subr.bf16.mxu0 0
    %1368 = vmatpush1.bf16.msra.mxu0 %v1112
    %1369 = vmatprep.subr.bf16.mxu0 0
    %1370 = vmatpush1.bf16.msra.mxu0 %v1115
    %1371 = vmatprep.mubr.bf16.mxu0 %v571
    %1372 = vmatmul.mubr.bf16.gmra.mrb[0].mxu0 %v570
    %v1373 = vpop.f32.mrb[0].mxu0
    %v1374 = vadd.f32 %v1333, %v1373
    %v1375 = vpop.f32.mrb[0].mxu0
    %v1376 = vpop.f32.mrb[0].mxu0
    %v1377 = vadd.f32 %v1336, %v1376
    %v1378 = vpop.f32.mrb[0].mxu0
    %1379 = vdwg.mxu0
    %v1380 = vmax.f32 %v1290, 0.0
    %v1381 = vmax.f32 %v1292, 0.0
    %v1382 = vmax.f32 %v1374, 0.0
    %v1383 = vmax.f32 %v1294, 0.0
    %v1384 = vmax.f32 %v1296, 0.0
    %v1385 = vmax.f32 %v1377, 0.0
    %v1386 = vpack.c.bf16 %v1383, %v1380
    %v1387 = vpack.c.bf16 %v1384, %v1381
    %v1388 = vpack.c.bf16 %v1385, %v1382
    %v1389 = vld [vmem:[#allocation6] sm:$0xf]
    %v1390 = vld [vmem:[#allocation6 + $0x4] sm:$0xf]
    %v1391 = vld [vmem:[#allocation6 + $0x8] sm:$0xf]
    %v1392 = vld [vmem:[#allocation6 + $0xc] sm:$0xf]
    %v1393 = vld [vmem:[#allocation6 + $0x10] sm:$0xf]
    %v1394 = vld [vmem:[#allocation6 + $0x14] sm:$0xf]
    %v1395 = vld [vmem:[#allocation6 + $0x18] sm:$0xf]
    %v1396 = vld [vmem:[#allocation6 + $0x1c] sm:$0xf]
    %v1397 = vld [vmem:[#allocation6 + $0x20] sm:$0xf]
    %v1398 = vld [vmem:[#allocation6 + $0x24] sm:$0xf]
    %v1399 = vld [vmem:[#allocation6 + $0x28] sm:$0xf]
    %v1400 = vld [vmem:[#allocation6 + $0x2c] sm:$0xf]
    %v1401 = vld [vmem:[#allocation6 + $0x30] sm:$0xf]
    %v1402 = vld [vmem:[#allocation6 + $0x34] sm:$0xf]
    %v1403 = vld [vmem:[#allocation6 + $0x38] sm:$0xf]
    %v1404 = vld [vmem:[#allocation6 + $0x3c] sm:$0xf]
    %v1405 = vld [vmem:[#allocation6 + $0x40] sm:$0xf]
    %v1406 = vld [vmem:[#allocation6 + $0x44] sm:$0xf]
    %v1407 = vld [vmem:[#allocation6 + $0x48] sm:$0xf]
    %v1408 = vld [vmem:[#allocation6 + $0x4c] sm:$0xf]
    %v1409 = vld [vmem:[#allocation6 + $0x50] sm:$0xf]
    %v1410 = vld [vmem:[#allocation6 + $0x54] sm:$0xf]
    %v1411 = vld [vmem:[#allocation6 + $0x58] sm:$0xf]
    %v1412 = vld [vmem:[#allocation6 + $0x5c] sm:$0xf]
    %v1413 = vld [vmem:[#allocation6 + $0x60] sm:$0xf]
    %v1414 = vld [vmem:[#allocation6 + $0x64] sm:$0xf]
    %v1415 = vld [vmem:[#allocation6 + $0x68] sm:$0xf]
    %v1416 = vld [vmem:[#allocation6 + $0x6c] sm:$0xf]
    %v1417 = vld [vmem:[#allocation6 + $0x70] sm:$0xf]
    %v1418 = vld [vmem:[#allocation6 + $0x74] sm:$0xf]
    %v1419 = vld [vmem:[#allocation6 + $0x78] sm:$0xf]
    %v1420 = vld [vmem:[#allocation6 + $0x7c] sm:$0xf]
    %v1421 = vld [vmem:[#allocation6 + $0x80] sm:$0xf]
    %v1422 = vld [vmem:[#allocation6 + $0x84] sm:$0xf]
    %v1423 = vld [vmem:[#allocation6 + $0x88] sm:$0xf]
    %v1424 = vld [vmem:[#allocation6 + $0x8c] sm:$0xf]
    %v1425 = vld [vmem:[#allocation6 + $0x90] sm:$0xf]
    %v1426 = vld [vmem:[#allocation6 + $0x94] sm:$0xf]
    %v1427 = vld [vmem:[#allocation6 + $0x98] sm:$0xf]
    %v1428 = vld [vmem:[#allocation6 + $0x9c] sm:$0xf]
    %v1429 = vld [vmem:[#allocation6 + $0xa0] sm:$0xf]
    %v1430 = vld [vmem:[#allocation6 + $0xa4] sm:$0xf]
    %v1431 = vld [vmem:[#allocation6 + $0xa8] sm:$0xf]
    %v1432 = vld [vmem:[#allocation6 + $0xac] sm:$0xf]
    %v1433 = vld [vmem:[#allocation6 + $0xb0] sm:$0xf]
    %v1434 = vld [vmem:[#allocation6 + $0xb4] sm:$0xf]
    %v1435 = vld [vmem:[#allocation6 + $0xb8] sm:$0xf]
    %v1436 = vld [vmem:[#allocation6 + $0xbc] sm:$0xf]
    %v1485 = vunpack.c.l.b16 %v1389
    %v1486 = vunpack.c.l.b16 %v1390
    %v1487 = vunpack.c.l.b16 %v1391
    %v1488 = vunpack.c.l.b16 %v1392
    %v1489 = vunpack.c.l.b16 %v1393
    %v1490 = vunpack.c.l.b16 %v1394
    %v1491 = vunpack.c.l.b16 %v1395
    %v1492 = vunpack.c.l.b16 %v1396
    %v1493 = vunpack.c.l.b16 %v1397
    %v1494 = vunpack.c.l.b16 %v1398
    %v1495 = vunpack.c.l.b16 %v1399
    %v1496 = vunpack.c.l.b16 %v1400
    %v1497 = vunpack.c.l.b16 %v1401
    %v1498 = vunpack.c.l.b16 %v1402
    %v1499 = vunpack.c.l.b16 %v1403
    %v1500 = vunpack.c.l.b16 %v1404
    %v1501 = vunpack.c.l.b16 %v1405
    %v1502 = vunpack.c.l.b16 %v1406
    %v1503 = vunpack.c.l.b16 %v1407
    %v1504 = vunpack.c.l.b16 %v1408
    %v1505 = vunpack.c.l.b16 %v1409
    %v1506 = vunpack.c.l.b16 %v1410
    %v1507 = vunpack.c.l.b16 %v1411
    %v1508 = vunpack.c.l.b16 %v1412
    %v1509 = vunpack.c.l.b16 %v1413
    %v1510 = vunpack.c.l.b16 %v1414
    %v1511 = vunpack.c.l.b16 %v1415
    %v1512 = vunpack.c.l.b16 %v1416
    %v1513 = vunpack.c.l.b16 %v1417
    %v1514 = vunpack.c.l.b16 %v1418
    %v1515 = vunpack.c.l.b16 %v1419
    %v1516 = vunpack.c.l.b16 %v1420
    %v1517 = vunpack.c.l.b16 %v1421
    %v1518 = vunpack.c.l.b16 %v1422
    %v1519 = vunpack.c.l.b16 %v1423
    %v1520 = vunpack.c.l.b16 %v1424
    %v1521 = vunpack.c.l.b16 %v1425
    %v1522 = vunpack.c.l.b16 %v1426
    %v1523 = vunpack.c.l.b16 %v1427
    %v1524 = vunpack.c.l.b16 %v1428
    %v1525 = vunpack.c.l.b16 %v1429
    %v1526 = vunpack.c.l.b16 %v1430
    %v1527 = vunpack.c.l.b16 %v1431
    %v1528 = vunpack.c.l.b16 %v1432
    %v1529 = vunpack.c.l.b16 %v1433
    %v1530 = vunpack.c.l.b16 %v1434
    %v1531 = vunpack.c.l.b16 %v1435
    %v1532 = vunpack.c.l.b16 %v1436
    %v1533 = vpack.c.b16 %v1486, %v1485
    %v1534 = vpack.c.b16 %v1488, %v1487
    %v1535 = vpack.c.b16 %v1490, %v1489
    %v1536 = vpack.c.b16 %v1492, %v1491
    %v1537 = vpack.c.b16 %v1494, %v1493
    %v1538 = vpack.c.b16 %v1496, %v1495
    %v1539 = vpack.c.b16 %v1498, %v1497
    %v1540 = vpack.c.b16 %v1500, %v1499
    %v1541 = vpack.c.b16 %v1502, %v1501
    %v1542 = vpack.c.b16 %v1504, %v1503
    %v1543 = vpack.c.b16 %v1506, %v1505
    %v1544 = vpack.c.b16 %v1508, %v1507
    %v1545 = vpack.c.b16 %v1510, %v1509
    %v1546 = vpack.c.b16 %v1512, %v1511
    %v1547 = vpack.c.b16 %v1514, %v1513
    %v1548 = vpack.c.b16 %v1516, %v1515
    %v1549 = vpack.c.b16 %v1518, %v1517
    %v1550 = vpack.c.b16 %v1520, %v1519
    %v1551 = vpack.c.b16 %v1522, %v1521
    %v1552 = vpack.c.b16 %v1524, %v1523
    %v1553 = vpack.c.b16 %v1526, %v1525
    %v1554 = vpack.c.b16 %v1528, %v1527
    %v1555 = vpack.c.b16 %v1530, %v1529
    %v1556 = vpack.c.b16 %v1532, %v1531
    %1581 = vmatprep.subr.bf16.mxu0 0
    %1582 = vmatpush1.bf16.msra.mxu0 %v1533
    %1583 = vmatprep.subr.bf16.mxu0 0
    %1584 = vmatpush1.bf16.msra.mxu0 %v1534
    %1585 = vmatprep.subr.bf16.mxu0 0
    %1586 = vmatpush1.bf16.msra.mxu0 %v1535
    %1587 = vmatprep.subr.bf16.mxu0 0
    %1588 = vmatpush1.bf16.msra.mxu0 %v1536
    %1589 = vmatprep.subr.bf16.mxu0 0
    %1590 = vmatpush1.bf16.msra.mxu0 %v1537
    %1591 = vmatprep.subr.bf16.mxu0 0
    %1592 = vmatpush1.bf16.msra.mxu0 %v1538
    %1593 = vmatprep.subr.bf16.mxu0 0
    %1594 = vmatpush1.bf16.msra.mxu0 %v1539
    %1595 = vmatprep.subr.bf16.mxu0 0
    %1596 = vmatpush1.bf16.msra.mxu0 %v1540
    %1597 = vmatprep.subr.bf16.mxu0 0
    %1598 = vmatpush1.bf16.msra.mxu0 %v1541
    %1599 = vmatprep.subr.bf16.mxu0 0
    %1600 = vmatpush1.bf16.msra.mxu0 %v1542
    %1601 = vmatprep.subr.bf16.mxu0 0
    %1602 = vmatpush1.bf16.msra.mxu0 %v1543
    %1603 = vmatprep.subr.bf16.mxu0 0
    %1604 = vmatpush1.bf16.msra.mxu0 %v1544
    %1605 = vmatprep.subr.bf16.mxu0 0
    %1606 = vmatpush1.bf16.msra.mxu0 %v1545
    %1607 = vmatprep.subr.bf16.mxu0 0
    %1608 = vmatpush1.bf16.msra.mxu0 %v1546
    %1609 = vmatprep.subr.bf16.mxu0 0
    %1610 = vmatpush1.bf16.msra.mxu0 %v1547
    %1611 = vmatprep.subr.bf16.mxu0 0
    %1612 = vmatpush1.bf16.msra.mxu0 %v1548
    %1613 = vmatprep.mubr.bf16.mxu0 %v1387
    %1614 = vmatmul.mubr.bf16.gmra.mrb[0].mxu0 %v1386
    %v1615 = vpop.f32.mrb[0].mxu0
    %v1616 = vadd.f32 0.0, %v1615
    %v1617 = vpop.f32.mrb[0].mxu0
    %v1618 = vpop.f32.mrb[0].mxu0
    %v1619 = vadd.f32 0.0, %v1618
    %v1620 = vpop.f32.mrb[0].mxu0
    %1621 = vdwg.mxu0
    %1622 = vmatprep.subr.bf16.mxu0 0
    %1623 = vmatpush1.bf16.msra.mxu0 %v1549
    %1624 = vmatprep.subr.bf16.mxu0 0
    %1625 = vmatpush1.bf16.msra.mxu0 %v1550
    %1626 = vmatprep.subr.bf16.mxu0 0
    %1627 = vmatpush1.bf16.msra.mxu0 %v1551
    %1628 = vmatprep.subr.bf16.mxu0 0
    %1629 = vmatpush1.bf16.msra.mxu0 %v1552
    %1630 = vmatprep.subr.bf16.mxu0 0
    %1631 = vmatpush1.bf16.msra.mxu0 %v1553
    %1632 = vmatprep.subr.bf16.mxu0 0
    %1633 = vmatpush1.bf16.msra.mxu0 %v1554
    %1634 = vmatprep.subr.bf16.mxu0 0
    %1635 = vmatpush1.bf16.msra.mxu0 %v1555
    %1636 = vmatprep.subr.bf16.mxu0 0
    %1637 = vmatpush1.bf16.msra.mxu0 %v1556
    %1638 = vmatprep.subr.bf16.mxu0 0
    %1639 = vmatpush1.bf16.msra.mxu0 0
    %1640 = vmatprep.subr.bf16.mxu0 0
    %1641 = vmatpush1.bf16.msra.mxu0 0
    %1642 = vmatprep.subr.bf16.mxu0 0
    %1643 = vmatpush1.bf16.msra.mxu0 0
    %1644 = vmatprep.subr.bf16.mxu0 0
    %1645 = vmatpush1.bf16.msra.mxu0 0
    %1646 = vmatprep.subr.bf16.mxu0 0
    %1647 = vmatpush1.bf16.msra.mxu0 0
    %1648 = vmatprep.subr.bf16.mxu0 0
    %1649 = vmatpush1.bf16.msra.mxu0 0
    %1650 = vmatprep.subr.bf16.mxu0 0
    %1651 = vmatpush1.bf16.msra.mxu0 0
    %1652 = vmatprep.subr.bf16.mxu0 0
    %1653 = vmatpush1.bf16.msra.mxu0 0
    %1654 = vmatprep.mubr.bf16.mxu0 0
    %1655 = vmatmul.mubr.bf16.gmra.mrb[0].mxu0 %v1388
    %v1656 = vpop.f32.mrb[0].mxu0
    %v1657 = vadd.f32 %v1616, %v1656
    %v1658 = vpop.f32.mrb[0].mxu0
    %v1659 = vpop.f32.mrb[0].mxu0
    %v1660 = vadd.f32 %v1619, %v1659
    %v1661 = vpop.f32.mrb[0].mxu0
    %1662 = vdwg.mxu0
    %v1663 = vmax.f32 %v1657, 0.0
    %v1664 = vmax.f32 %v1660, 0.0
    %v1665 = vpack.c.bf16 %v1664, %v1663
    %v1666 = vld [vmem:[#allocation7] sm:$0xff]
    %v1667 = vld [vmem:[#allocation7 + $0x8] sm:$0xff]
    %v1668 = vld [vmem:[#allocation7 + $0x10] sm:$0xff]
    %v1669 = vld [vmem:[#allocation7 + $0x18] sm:$0xff]
    %v1670 = vld [vmem:[#allocation7 + $0x20] sm:$0xff]
    %v1671 = vld [vmem:[#allocation7 + $0x28] sm:$0xff]
    %v1672 = vld [vmem:[#allocation7 + $0x30] sm:$0xff]
    %v1673 = vld [vmem:[#allocation7 + $0x38] sm:$0xff]
    %v1674 = vld [vmem:[#allocation7 + $0x40] sm:$0xff]
    %v1675 = vld [vmem:[#allocation7 + $0x48] sm:$0xff]
    %v1676 = vld [vmem:[#allocation7 + $0x50] sm:$0xff]
    %v1677 = vld [vmem:[#allocation7 + $0x58] sm:$0xff]
    %v1678 = vld [vmem:[#allocation7 + $0x60] sm:$0xff]
    %v1679 = vld [vmem:[#allocation7 + $0x68] sm:$0xff]
    %v1680 = vld [vmem:[#allocation7 + $0x70] sm:$0xff]
    %v1681 = vld [vmem:[#allocation7 + $0x78] sm:$0xff]
    %v1698 = vunpack.c.l.b16 %v1666
    %v1699 = vunpack.c.h.b16 %v1666
    %v1700 = vunpack.c.l.b16 %v1667
    %v1701 = vunpack.c.h.b16 %v1667
    %v1702 = vunpack.c.l.b16 %v1668
    %v1703 = vunpack.c.h.b16 %v1668
    %v1704 = vunpack.c.l.b16 %v1669
    %v1705 = vunpack.c.h.b16 %v1669
    %v1706 = vunpack.c.l.b16 %v1670
    %v1707 = vunpack.c.h.b16 %v1670
    %v1708 = vunpack.c.l.b16 %v1671
    %v1709 = vunpack.c.h.b16 %v1671
    %v1710 = vunpack.c.l.b16 %v1672
    %v1711 = vunpack.c.h.b16 %v1672
    %v1712 = vunpack.c.l.b16 %v1673
    %v1713 = vunpack.c.h.b16 %v1673
    %v1714 = vunpack.c.l.b16 %v1674
    %v1715 = vunpack.c.h.b16 %v1674
    %v1716 = vunpack.c.l.b16 %v1675
    %v1717 = vunpack.c.h.b16 %v1675
    %v1718 = vunpack.c.l.b16 %v1676
    %v1719 = vunpack.c.h.b16 %v1676
    %v1720 = vunpack.c.l.b16 %v1677
    %v1721 = vunpack.c.h.b16 %v1677
    %v1722 = vunpack.c.l.b16 %v1678
    %v1723 = vunpack.c.h.b16 %v1678
    %v1724 = vunpack.c.l.b16 %v1679
    %v1725 = vunpack.c.h.b16 %v1679
    %v1726 = vunpack.c.l.b16 %v1680
    %v1727 = vunpack.c.h.b16 %v1680
    %v1728 = vunpack.c.l.b16 %v1681
    %v1729 = vunpack.c.h.b16 %v1681
    %v1730 = vpack.c.b16 %v1700, %v1698
    %v1731 = vpack.c.b16 %v1701, %v1699
    %v1732 = vpack.c.b16 %v1704, %v1702
    %v1733 = vpack.c.b16 %v1705, %v1703
    %v1734 = vpack.c.b16 %v1708, %v1706
    %v1735 = vpack.c.b16 %v1709, %v1707
    %v1736 = vpack.c.b16 %v1712, %v1710
    %v1737 = vpack.c.b16 %v1713, %v1711
    %v1738 = vpack.c.b16 %v1716, %v1714
    %v1739 = vpack.c.b16 %v1717, %v1715
    %v1740 = vpack.c.b16 %v1720, %v1718
    %v1741 = vpack.c.b16 %v1721, %v1719
    %v1742 = vpack.c.b16 %v1724, %v1722
    %v1743 = vpack.c.b16 %v1725, %v1723
    %v1744 = vpack.c.b16 %v1728, %v1726
    %v1745 = vpack.c.b16 %v1729, %v1727
    %1762 = vmatprep.subr.bf16.mxu0 %v1731
    %1763 = vmatpush1.bf16.msra.mxu0 %v1730
    %1764 = vmatprep.subr.bf16.mxu0 %v1733
    %1765 = vmatpush1.bf16.msra.mxu0 %v1732
    %1766 = vmatprep.subr.bf16.mxu0 %v1735
    %1767 = vmatpush1.bf16.msra.mxu0 %v1734
    %1768 = vmatprep.subr.bf16.mxu0 %v1737
    %1769 = vmatpush1.bf16.msra.mxu0 %v1736
    %1770 = vmatprep.subr.bf16.mxu0 %v1739
    %1771 = vmatpush1.bf16.msra.mxu0 %v1738
    %1772 = vmatprep.subr.bf16.mxu0 %v1741
    %1773 = vmatpush1.bf16.msra.mxu0 %v1740
    %1774 = vmatprep.subr.bf16.mxu0 %v1743
    %1775 = vmatpush1.bf16.msra.mxu0 %v1742
    %1776 = vmatprep.subr.bf16.mxu0 %v1745
    %1777 = vmatpush1.bf16.msra.mxu0 %v1744
    %1778 = vmatprep.subr.bf16.mxu0 0
    %1779 = vmatpush1.bf16.msra.mxu0 0
    %1780 = vmatprep.subr.bf16.mxu0 0
    %1781 = vmatpush1.bf16.msra.mxu0 0
    %1782 = vmatprep.subr.bf16.mxu0 0
    %1783 = vmatpush1.bf16.msra.mxu0 0
    %1784 = vmatprep.subr.bf16.mxu0 0
    %1785 = vmatpush1.bf16.msra.mxu0 0
    %1786 = vmatprep.subr.bf16.mxu0 0
    %1787 = vmatpush1.bf16.msra.mxu0 0
    %1788 = vmatprep.subr.bf16.mxu0 0
    %1789 = vmatpush1.bf16.msra.mxu0 0
    %1790 = vmatprep.subr.bf16.mxu0 0
    %1791 = vmatpush1.bf16.msra.mxu0 0
    %1792 = vmatprep.subr.bf16.mxu0 0
    %1793 = vmatpush1.bf16.msra.mxu0 0
    %1794 = vmatprep.mubr.bf16.mxu0 0
    %1795 = vmatmul.mubr.bf16.gmra.mrb[0].mxu0 %v1665
    %v1796 = vpop.f32.mrb[0].mxu0
    %v1797 = vadd.f32 0.0, %v1796
    %v1798 = vpop.f32.mrb[0].mxu0
    %v1799 = vadd.f32 0.0, %v1798
    %v1800 = vpop.f32.mrb[0].mxu0
    %v1801 = vadd.f32 0.0, %v1800
    %v1802 = vpop.f32.mrb[0].mxu0
    %v1803 = vadd.f32 0.0, %v1802
    %1804 = vdwg.mxu0
    %1805 = vst [vmem:[%s5] sm:$0xff] %v1797
    %1806 = vst [vmem:[%s5 + $0x8] sm:$0xff] %v1799
    %1807 = vst [vmem:[%s5 + $0x10] sm:$0xff] %v1801
    %1808 = vst [vmem:[%s5 + $0x18] sm:$0xff] %v1803
    // Predicated region
    $region38: #{neural_network3_forward.1} parent=1 // pred_check
      _
    $region39: #{neural_network3_forward.1} parent=1 // pred_check_branch
      %1810 = sbr.rel (0) target = $region41
    $region40: #{neural_network3_forward.1} parent=1 // pred_region
      _
    $region41: #{neural_network3_forward.1} parent=1 // pred_fallthru
      _
    // Predicated region
    $region42: #{neural_network3_forward.1} parent=1 // pred_check
      _
    $region43: #{neural_network3_forward.1} parent=1 // pred_check_branch
      %1812 = sbr.rel (0) target = $region45
    $region44: #{neural_network3_forward.1} parent=1 // pred_region
      _
    $region45: #{neural_network3_forward.1} parent=1 // pred_fallthru
      _
    %1813 = vsyncpa [#allocation3], 1
    %1814 = vsyncpa [#allocation5], 1
    %1815 = vsyncpa [#allocation8], 1

</llo_original>
